<compile_context>
chip_gen: v7x
topology: tpu7x:2x2x1
jax: 0.10.0
libtpu: 0.0.40
codegen_flags: <defaults>
</compile_context>

<pallas_src>
import math
import functools

import jax
import jax.numpy as jnp
from jax import lax
from jax.experimental import pallas as pl
from jax.experimental.pallas import tpu as pltpu


def _mha_kernel(q_ref, k_ref, v_ref,
                wq_ref, bq_ref, wk_ref, bk_ref, wv_ref, bv_ref, wo_ref, bo_ref,
                o_ref, *, head, d_k):
    # Block shapes: q/out (1, tq, D); k/v (1, S, D); weights (D, D) stored [in, out]; biases (1, D).
    x_q = q_ref[0]                      # (tq, D)
    x_k = k_ref[0]                      # (S, D)
    x_v = v_ref[0]                      # (S, D)

    # Projections: x @ W + b.  Weights are already [in, out]; W_q/b_q are pre-scaled by 1/sqrt(d_k).
    q = jnp.dot(x_q, wq_ref[...], preferred_element_type=jnp.float32) + bq_ref[...]   # (tq, D)
    k = jnp.dot(x_k, wk_ref[...], preferred_element_type=jnp.float32) + bk_ref[...]   # (S, D)
    v = jnp.dot(x_v, wv_ref[...], preferred_element_type=jnp.float32) + bv_ref[...]   # (S, D)

    wo = wo_ref[...]                    # (D, D) [in, out]

    tq = q.shape[0]
    d_model = wo.shape[1]
    acc = jnp.zeros((tq, d_model), jnp.float32)

    # Head count is small & static -> unrolled Python loop.
    # TODO(synk): with toy d_k < 128 these lane-axis slices are masked; real configs want d_k >= 128.
    for h in range(head):
        s0 = h * d_k
        qh = q[:, s0:s0 + d_k]          # (tq, d_k)
        kh = k[:, s0:s0 + d_k]          # (S, d_k)
        vh = v[:, s0:s0 + d_k]          # (S, d_k)

        # scores = qh @ kh^T without materializing a transpose (contract dim 1 of both operands).
        scores = lax.dot_general(qh, kh, (((1,), (1,)), ((), ())),
                                 preferred_element_type=jnp.float32)                  # (tq, S)
        # TODO(synk): mask handling (masked_fill with -1e9) omitted; forward is called with mask=None.
        m = jnp.max(scores, axis=-1, keepdims=True)
        e = jnp.exp(scores - m)                                # un-normalized softmax numerator
        l = jnp.sum(e, axis=-1, keepdims=True)
        # TODO(synk): dropout on attention probs is identity (eval mode / deterministic run).

        oh = jnp.dot(e, vh, preferred_element_type=jnp.float32)                       # (tq, d_k)
        oh = oh * pl.reciprocal(l, approx=True)                # deferred normalization (EUP)

        # Fold the output projection into the head loop -> no lane-axis concatenate.
        acc = acc + jnp.dot(oh, wo[s0:s0 + d_k, :], preferred_element_type=jnp.float32)

    o_ref[0] = (acc + bo_ref[...]).astype(o_ref.dtype)


def mha_forward(q, k, v, params, *, head):
    """q, k, v: (B, S, D) float32.  params: PyTorch-style [out, in] weights and (1, out) biases."""
    B, S, D = q.shape
    d_k = D // head
    scale = 1.0 / math.sqrt(d_k)

    # Pre-transpose once in HBM to [in, out]; fold the attention scale into the Q projection.
    wq_t = jnp.transpose(params["wq"]) * scale
    bq_s = params["bq"] * scale
    wk_t = jnp.transpose(params["wk"])
    wv_t = jnp.transpose(params["wv"])
    wo_t = jnp.transpose(params["wo"])

    # Query-tile size: second (parallel) grid axis so multi-core chips have enough steps.
    tq = S if S <= 128 else 128
    assert S % tq == 0, "sequence length must be divisible by the query tile"
    n_q = S // tq

    q_spec = pl.BlockSpec((1, tq, D), lambda b, i: (b, i, 0))
    kv_spec = pl.BlockSpec((1, S, D), lambda b, i: (b, 0, 0))
    w_spec = pl.BlockSpec((D, D), lambda b, i: (0, 0))
    b_spec = pl.BlockSpec((1, D), lambda b, i: (0, 0))

    # Rough VMEM footprint: weights/biases + double-buffered activation blocks + intermediates.
    est = 4 * (4 * D * D + 4 * D                      # resident weights + biases
               + 2 * (2 * tq * D + 2 * S * D)         # double-buffered q/out + k/v blocks
               + 3 * tq * D + 3 * S * D               # projected q and k/v
               + tq * S + 2 * tq * D)                 # per-head scores + accumulator slack
    vmem_limit = int(min(max(2 * est, 32 * 2**20), 48 * 2**20))

    kernel = functools.partial(_mha_kernel, head=head, d_k=d_k)

    return pl.pallas_call(
        kernel,
        out_shape=jax.ShapeDtypeStruct((B, S, D), q.dtype),
        grid_spec=pltpu.PrefetchScalarGridSpec(
            num_scalar_prefetch=0,
            grid=(B, n_q),
            in_specs=[q_spec, kv_spec, kv_spec,
                      w_spec, b_spec, w_spec, b_spec, w_spec, b_spec, w_spec, b_spec],
            out_specs=q_spec,
        ),
        compiler_params=pltpu.CompilerParams(
            dimension_semantics=("parallel", "parallel"),
            vmem_limit_bytes=vmem_limit,
        ),
    )(q, k, v, wq_t, bq_s, wk_t, params["bk"], wv_t, params["bv"], wo_t, params["bo"])


def _init_linear(key, d_in, d_out):
    # Deterministic init mimicking nn.Linear: U(-1/sqrt(in), 1/sqrt(in)) for W and b.
    kw, kb = jax.random.split(key)
    bound = 1.0 / math.sqrt(d_in)
    w = jax.random.uniform(kw, (d_out, d_in), jnp.float32, -bound, bound)
    b = jax.random.uniform(kb, (1, d_out), jnp.float32, -bound, bound)
    return w, b


def _reference(q, k, v, params, head):
    # Pure-JAX reference matching the PyTorch forward (mask=None, dropout in eval mode).
    B, S, D = q.shape
    d_k = D // head

    def lin(x, w, b):
        return x @ w.T + b

    def split_heads(x):
        return x.reshape(B, S, head, d_k).transpose(0, 2, 1, 3)   # (B, H, S, d_k)

    qh = split_heads(lin(q, params["wq"], params["bq"]))
    kh = split_heads(lin(k, params["wk"], params["bk"]))
    vh = split_heads(lin(v, params["wv"], params["bv"]))

    scores = jnp.einsum("bhsd,bhtd->bhst", qh, kh) / math.sqrt(d_k)
    probs = jax.nn.softmax(scores, axis=-1)
    out = jnp.einsum("bhst,bhtd->bhsd", probs, vh)
    concat = out.transpose(0, 2, 1, 3).reshape(B, S, D)
    return lin(concat, params["wo"], params["bo"])


if __name__ == "__main__":
    batch, seq, d_model, head = 2, 8, 32, 4

    root = jax.random.PRNGKey(0)
    k_q, k_k, k_v, k_wq, k_wk, k_wv, k_wo = jax.random.split(root, 7)

    q = jax.random.normal(k_q, (batch, seq, d_model), jnp.float32)
    k = jax.random.normal(k_k, (batch, seq, d_model), jnp.float32)
    v = jax.random.normal(k_v, (batch, seq, d_model), jnp.float32)

    wq, bq = _init_linear(k_wq, d_model, d_model)
    wk, bk = _init_linear(k_wk, d_model, d_model)
    wv, bv = _init_linear(k_wv, d_model, d_model)
    wo, bo = _init_linear(k_wo, d_model, d_model)
    params = dict(wq=wq, bq=bq, wk=wk, bk=bk, wv=wv, bv=bv, wo=wo, bo=bo)

    out = mha_forward(q, k, v, params, head=head)
    out = jax.block_until_ready(out)

    ref = _reference(q, k, v, params, head)
    assert out.shape == (batch, seq, d_model)
    # Tolerance loosened slightly vs 1e-5 because the softmax denominator uses the EUP
    # approximate reciprocal (relative error ~1e-4).
    assert jnp.allclose(out, ref, rtol=1e-3, atol=1e-3), "mismatch vs JAX reference"

    print("KERNEL_OK")
</pallas_src>

<mosaic_0001>
module attributes {stable_mosaic.version = 11 : i64} {
  func.func @_mha_kernel(%arg0: i32, %arg1: i32, %arg2: memref<1x8x32xf32, #tpu.memory_space<vmem>>, %arg3: memref<1x8x32xf32, #tpu.memory_space<vmem>>, %arg4: memref<1x8x32xf32, #tpu.memory_space<vmem>>, %arg5: memref<32x32xf32, #tpu.memory_space<vmem>>, %arg6: memref<1x32xf32, #tpu.memory_space<vmem>>, %arg7: memref<32x32xf32, #tpu.memory_space<vmem>>, %arg8: memref<1x32xf32, #tpu.memory_space<vmem>>, %arg9: memref<32x32xf32, #tpu.memory_space<vmem>>, %arg10: memref<1x32xf32, #tpu.memory_space<vmem>>, %arg11: memref<32x32xf32, #tpu.memory_space<vmem>>, %arg12: memref<1x32xf32, #tpu.memory_space<vmem>>, %arg13: memref<1x8x32xf32, #tpu.memory_space<vmem>>) attributes {dimension_semantics = [#tpu.dimension_semantics<parallel>, #tpu.dimension_semantics<parallel>], iteration_bounds = array<i64: 2, 1>, scalar_prefetch = 0 : i64, scratch_operands = 0 : i64, tpu.core_type = #tpu.core_type<tc>, window_params = [{transform_indices = @transform_0, window_bounds = array<i64: 1, 8, 32>}, {transform_indices = @transform_1, window_bounds = array<i64: 1, 8, 32>}, {transform_indices = @transform_2, window_bounds = array<i64: 1, 8, 32>}, {pipeline_mode = #tpu.pipeline_mode<synchronous>, transform_indices = @transform_3, window_bounds = array<i64: 32, 32>}, {pipeline_mode = #tpu.pipeline_mode<synchronous>, transform_indices = @transform_4, window_bounds = array<i64: 1, 32>}, {pipeline_mode = #tpu.pipeline_mode<synchronous>, transform_indices = @transform_5, window_bounds = array<i64: 32, 32>}, {pipeline_mode = #tpu.pipeline_mode<synchronous>, transform_indices = @transform_6, window_bounds = array<i64: 1, 32>}, {pipeline_mode = #tpu.pipeline_mode<synchronous>, transform_indices = @transform_7, window_bounds = array<i64: 32, 32>}, {pipeline_mode = #tpu.pipeline_mode<synchronous>, transform_indices = @transform_8, window_bounds = array<i64: 1, 32>}, {pipeline_mode = #tpu.pipeline_mode<synchronous>, transform_indices = @transform_9, window_bounds = array<i64: 32, 32>}, {pipeline_mode = #tpu.pipeline_mode<synchronous>, transform_indices = @transform_10, window_bounds = array<i64: 1, 32>}, {transform_indices = @transform_11, window_bounds = array<i64: 1, 8, 32>}]} {
    %c0 = arith.constant 0 : index
    %c0_0 = arith.constant 0 : index
    %c0_1 = arith.constant 0 : index
    %0 = vector.load %arg2[%c0, %c0_0, %c0_1] : memref<1x8x32xf32, #tpu.memory_space<vmem>>, vector<1x8x32xf32>
    %1 = vector.shape_cast %0 : vector<1x8x32xf32> to vector<8x32xf32>
    %c0_2 = arith.constant 0 : index
    %c0_3 = arith.constant 0 : index
    %c0_4 = arith.constant 0 : index
    %2 = vector.load %arg3[%c0_2, %c0_3, %c0_4] : memref<1x8x32xf32, #tpu.memory_space<vmem>>, vector<1x8x32xf32>
    %3 = vector.shape_cast %2 : vector<1x8x32xf32> to vector<8x32xf32>
    %c0_5 = arith.constant 0 : index
    %c0_6 = arith.constant 0 : index
    %c0_7 = arith.constant 0 : index
    %4 = vector.load %arg4[%c0_5, %c0_6, %c0_7] : memref<1x8x32xf32, #tpu.memory_space<vmem>>, vector<1x8x32xf32>
    %5 = vector.shape_cast %4 : vector<1x8x32xf32> to vector<8x32xf32>
    %c0_8 = arith.constant 0 : index
    %c0_9 = arith.constant 0 : index
    %6 = vector.load %arg5[%c0_8, %c0_9] : memref<32x32xf32, #tpu.memory_space<vmem>>, vector<32x32xf32>
    %cst = arith.constant dense<0.000000e+00> : vector<8x32xf32>
    %7 = tpu.matmul %1, %6, %cst {dimension_numbers = #tpu.dot_dimension_numbers<[1], [0], [0], [1], [0, 0, 1, 1], [], []>} : vector<8x32xf32>, vector<32x32xf32>, vector<8x32xf32> -> vector<8x32xf32>
    %c0_10 = arith.constant 0 : index
    %c0_11 = arith.constant 0 : index
    %8 = vector.load %arg6[%c0_10, %c0_11] : memref<1x32xf32, #tpu.memory_space<vmem>>, vector<1x32xf32>
    %9 = vector.broadcast %8 : vector<1x32xf32> to vector<8x32xf32>
    %10 = arith.addf %7, %9 : vector<8x32xf32>
    %c0_12 = arith.constant 0 : index
    %c0_13 = arith.constant 0 : index
    %11 = vector.load %arg7[%c0_12, %c0_13] : memref<32x32xf32, #tpu.memory_space<vmem>>, vector<32x32xf32>
    %cst_14 = arith.constant dense<0.000000e+00> : vector<8x32xf32>
    %12 = tpu.matmul %3, %11, %cst_14 {dimension_numbers = #tpu.dot_dimension_numbers<[1], [0], [0], [1], [0, 0, 1, 1], [], []>} : vector<8x32xf32>, vector<32x32xf32>, vector<8x32xf32> -> vector<8x32xf32>
    %c0_15 = arith.constant 0 : index
    %c0_16 = arith.constant 0 : index
    %13 = vector.load %arg8[%c0_15, %c0_16] : memref<1x32xf32, #tpu.memory_space<vmem>>, vector<1x32xf32>
    %14 = vector.broadcast %13 : vector<1x32xf32> to vector<8x32xf32>
    %15 = arith.addf %12, %14 : vector<8x32xf32>
    %c0_17 = arith.constant 0 : index
    %c0_18 = arith.constant 0 : index
    %16 = vector.load %arg9[%c0_17, %c0_18] : memref<32x32xf32, #tpu.memory_space<vmem>>, vector<32x32xf32>
    %cst_19 = arith.constant dense<0.000000e+00> : vector<8x32xf32>
    %17 = tpu.matmul %5, %16, %cst_19 {dimension_numbers = #tpu.dot_dimension_numbers<[1], [0], [0], [1], [0, 0, 1, 1], [], []>} : vector<8x32xf32>, vector<32x32xf32>, vector<8x32xf32> -> vector<8x32xf32>
    %c0_20 = arith.constant 0 : index
    %c0_21 = arith.constant 0 : index
    %18 = vector.load %arg10[%c0_20, %c0_21] : memref<1x32xf32, #tpu.memory_space<vmem>>, vector<1x32xf32>
    %19 = vector.broadcast %18 : vector<1x32xf32> to vector<8x32xf32>
    %20 = arith.addf %17, %19 : vector<8x32xf32>
    %c0_22 = arith.constant 0 : index
    %c0_23 = arith.constant 0 : index
    %21 = vector.load %arg11[%c0_22, %c0_23] : memref<32x32xf32, #tpu.memory_space<vmem>>, vector<32x32xf32>
    %cst_24 = arith.constant 0.000000e+00 : f32
    %22 = vector.broadcast %cst_24 : f32 to vector<8x32xf32>
    %23 = vector.extract_strided_slice %10 {offsets = [0, 0], sizes = [8, 8], strides = [1, 1]} : vector<8x32xf32> to vector<8x8xf32>
    %24 = vector.extract_strided_slice %15 {offsets = [0, 0], sizes = [8, 8], strides = [1, 1]} : vector<8x32xf32> to vector<8x8xf32>
    %25 = vector.extract_strided_slice %20 {offsets = [0, 0], sizes = [8, 8], strides = [1, 1]} : vector<8x32xf32> to vector<8x8xf32>
    %cst_25 = arith.constant dense<0.000000e+00> : vector<8x8xf32>
    %26 = tpu.matmul %23, %24, %cst_25 {dimension_numbers = #tpu.dot_dimension_numbers<[1], [1], [0], [0], [0, 0, 1, 0], [], []>} : vector<8x8xf32>, vector<8x8xf32>, vector<8x8xf32> -> vector<8x8xf32>
    %cst_26 = arith.constant dense<0xFF800000> : vector<8xf32>
    %27 = vector.multi_reduction <maximumf>, %26, %cst_26 [1] : vector<8x8xf32> to vector<8xf32>
    %28 = vector.shape_cast %27 : vector<8xf32> to vector<8x1xf32>
    %29 = vector.broadcast %28 : vector<8x1xf32> to vector<8x8xf32>
    %30 = arith.subf %26, %29 : vector<8x8xf32>
    %31 = math.exp %30 : vector<8x8xf32>
    %cst_27 = arith.constant dense<0.000000e+00> : vector<8xf32>
    %32 = vector.multi_reduction <add>, %31, %cst_27 [1] : vector<8x8xf32> to vector<8xf32>
    %33 = vector.shape_cast %32 : vector<8xf32> to vector<8x1xf32>
    %cst_28 = arith.constant dense<0.000000e+00> : vector<8x8xf32>
    %34 = tpu.matmul %31, %25, %cst_28 {dimension_numbers = #tpu.dot_dimension_numbers<[1], [0], [0], [1], [0, 0, 1, 1], [], []>} : vector<8x8xf32>, vector<8x8xf32>, vector<8x8xf32> -> vector<8x8xf32>
    %35 = tpu.reciprocal %33 {approx = true} : vector<8x1xf32> -> vector<8x1xf32>
    %36 = vector.broadcast %35 : vector<8x1xf32> to vector<8x8xf32>
    %37 = arith.mulf %34, %36 : vector<8x8xf32>
    %38 = vector.extract_strided_slice %21 {offsets = [0, 0], sizes = [8, 32], strides = [1, 1]} : vector<32x32xf32> to vector<8x32xf32>
    %cst_29 = arith.constant dense<0.000000e+00> : vector<8x32xf32>
    %39 = tpu.matmul %37, %38, %cst_29 {dimension_numbers = #tpu.dot_dimension_numbers<[1], [0], [0], [1], [0, 0, 1, 1], [], []>} : vector<8x8xf32>, vector<8x32xf32>, vector<8x32xf32> -> vector<8x32xf32>
    %40 = arith.addf %22, %39 : vector<8x32xf32>
    %41 = vector.extract_strided_slice %10 {offsets = [0, 8], sizes = [8, 8], strides = [1, 1]} : vector<8x32xf32> to vector<8x8xf32>
    %42 = vector.extract_strided_slice %15 {offsets = [0, 8], sizes = [8, 8], strides = [1, 1]} : vector<8x32xf32> to vector<8x8xf32>
    %43 = vector.extract_strided_slice %20 {offsets = [0, 8], sizes = [8, 8], strides = [1, 1]} : vector<8x32xf32> to vector<8x8xf32>
    %cst_30 = arith.constant dense<0.000000e+00> : vector<8x8xf32>
    %44 = tpu.matmul %41, %42, %cst_30 {dimension_numbers = #tpu.dot_dimension_numbers<[1], [1], [0], [0], [0, 0, 1, 0], [], []>} : vector<8x8xf32>, vector<8x8xf32>, vector<8x8xf32> -> vector<8x8xf32>
    %cst_31 = arith.constant dense<0xFF800000> : vector<8xf32>
    %45 = vector.multi_reduction <maximumf>, %44, %cst_31 [1] : vector<8x8xf32> to vector<8xf32>
    %46 = vector.shape_cast %45 : vector<8xf32> to vector<8x1xf32>
    %47 = vector.broadcast %46 : vector<8x1xf32> to vector<8x8xf32>
    %48 = arith.subf %44, %47 : vector<8x8xf32>
    %49 = math.exp %48 : vector<8x8xf32>
    %cst_32 = arith.constant dense<0.000000e+00> : vector<8xf32>
    %50 = vector.multi_reduction <add>, %49, %cst_32 [1] : vector<8x8xf32> to vector<8xf32>
    %51 = vector.shape_cast %50 : vector<8xf32> to vector<8x1xf32>
    %cst_33 = arith.constant dense<0.000000e+00> : vector<8x8xf32>
    %52 = tpu.matmul %49, %43, %cst_33 {dimension_numbers = #tpu.dot_dimension_numbers<[1], [0], [0], [1], [0, 0, 1, 1], [], []>} : vector<8x8xf32>, vector<8x8xf32>, vector<8x8xf32> -> vector<8x8xf32>
    %53 = tpu.reciprocal %51 {approx = true} : vector<8x1xf32> -> vector<8x1xf32>
    %54 = vector.broadcast %53 : vector<8x1xf32> to vector<8x8xf32>
    %55 = arith.mulf %52, %54 : vector<8x8xf32>
    %56 = vector.extract_strided_slice %21 {offsets = [8, 0], sizes = [8, 32], strides = [1, 1]} : vector<32x32xf32> to vector<8x32xf32>
    %cst_34 = arith.constant dense<0.000000e+00> : vector<8x32xf32>
    %57 = tpu.matmul %55, %56, %cst_34 {dimension_numbers = #tpu.dot_dimension_numbers<[1], [0], [0], [1], [0, 0, 1, 1], [], []>} : vector<8x8xf32>, vector<8x32xf32>, vector<8x32xf32> -> vector<8x32xf32>
    %58 = arith.addf %40, %57 : vector<8x32xf32>
    %59 = vector.extract_strided_slice %10 {offsets = [0, 16], sizes = [8, 8], strides = [1, 1]} : vector<8x32xf32> to vector<8x8xf32>
    %60 = vector.extract_strided_slice %15 {offsets = [0, 16], sizes = [8, 8], strides = [1, 1]} : vector<8x32xf32> to vector<8x8xf32>
    %61 = vector.extract_strided_slice %20 {offsets = [0, 16], sizes = [8, 8], strides = [1, 1]} : vector<8x32xf32> to vector<8x8xf32>
    %cst_35 = arith.constant dense<0.000000e+00> : vector<8x8xf32>
    %62 = tpu.matmul %59, %60, %cst_35 {dimension_numbers = #tpu.dot_dimension_numbers<[1], [1], [0], [0], [0, 0, 1, 0], [], []>} : vector<8x8xf32>, vector<8x8xf32>, vector<8x8xf32> -> vector<8x8xf32>
    %cst_36 = arith.constant dense<0xFF800000> : vector<8xf32>
    %63 = vector.multi_reduction <maximumf>, %62, %cst_36 [1] : vector<8x8xf32> to vector<8xf32>
    %64 = vector.shape_cast %63 : vector<8xf32> to vector<8x1xf32>
    %65 = vector.broadcast %64 : vector<8x1xf32> to vector<8x8xf32>
    %66 = arith.subf %62, %65 : vector<8x8xf32>
    %67 = math.exp %66 : vector<8x8xf32>
    %cst_37 = arith.constant dense<0.000000e+00> : vector<8xf32>
    %68 = vector.multi_reduction <add>, %67, %cst_37 [1] : vector<8x8xf32> to vector<8xf32>
    %69 = vector.shape_cast %68 : vector<8xf32> to vector<8x1xf32>
    %cst_38 = arith.constant dense<0.000000e+00> : vector<8x8xf32>
    %70 = tpu.matmul %67, %61, %cst_38 {dimension_numbers = #tpu.dot_dimension_numbers<[1], [0], [0], [1], [0, 0, 1, 1], [], []>} : vector<8x8xf32>, vector<8x8xf32>, vector<8x8xf32> -> vector<8x8xf32>
    %71 = tpu.reciprocal %69 {approx = true} : vector<8x1xf32> -> vector<8x1xf32>
    %72 = vector.broadcast %71 : vector<8x1xf32> to vector<8x8xf32>
    %73 = arith.mulf %70, %72 : vector<8x8xf32>
    %74 = vector.extract_strided_slice %21 {offsets = [16, 0], sizes = [8, 32], strides = [1, 1]} : vector<32x32xf32> to vector<8x32xf32>
    %cst_39 = arith.constant dense<0.000000e+00> : vector<8x32xf32>
    %75 = tpu.matmul %73, %74, %cst_39 {dimension_numbers = #tpu.dot_dimension_numbers<[1], [0], [0], [1], [0, 0, 1, 1], [], []>} : vector<8x8xf32>, vector<8x32xf32>, vector<8x32xf32> -> vector<8x32xf32>
    %76 = arith.addf %58, %75 : vector<8x32xf32>
    %77 = vector.extract_strided_slice %10 {offsets = [0, 24], sizes = [8, 8], strides = [1, 1]} : vector<8x32xf32> to vector<8x8xf32>
    %78 = vector.extract_strided_slice %15 {offsets = [0, 24], sizes = [8, 8], strides = [1, 1]} : vector<8x32xf32> to vector<8x8xf32>
    %79 = vector.extract_strided_slice %20 {offsets = [0, 24], sizes = [8, 8], strides = [1, 1]} : vector<8x32xf32> to vector<8x8xf32>
    %cst_40 = arith.constant dense<0.000000e+00> : vector<8x8xf32>
    %80 = tpu.matmul %77, %78, %cst_40 {dimension_numbers = #tpu.dot_dimension_numbers<[1], [1], [0], [0], [0, 0, 1, 0], [], []>} : vector<8x8xf32>, vector<8x8xf32>, vector<8x8xf32> -> vector<8x8xf32>
    %cst_41 = arith.constant dense<0xFF800000> : vector<8xf32>
    %81 = vector.multi_reduction <maximumf>, %80, %cst_41 [1] : vector<8x8xf32> to vector<8xf32>
    %82 = vector.shape_cast %81 : vector<8xf32> to vector<8x1xf32>
    %83 = vector.broadcast %82 : vector<8x1xf32> to vector<8x8xf32>
    %84 = arith.subf %80, %83 : vector<8x8xf32>
    %85 = math.exp %84 : vector<8x8xf32>
    %cst_42 = arith.constant dense<0.000000e+00> : vector<8xf32>
    %86 = vector.multi_reduction <add>, %85, %cst_42 [1] : vector<8x8xf32> to vector<8xf32>
    %87 = vector.shape_cast %86 : vector<8xf32> to vector<8x1xf32>
    %cst_43 = arith.constant dense<0.000000e+00> : vector<8x8xf32>
    %88 = tpu.matmul %85, %79, %cst_43 {dimension_numbers = #tpu.dot_dimension_numbers<[1], [0], [0], [1], [0, 0, 1, 1], [], []>} : vector<8x8xf32>, vector<8x8xf32>, vector<8x8xf32> -> vector<8x8xf32>
    %89 = tpu.reciprocal %87 {approx = true} : vector<8x1xf32> -> vector<8x1xf32>
    %90 = vector.broadcast %89 : vector<8x1xf32> to vector<8x8xf32>
    %91 = arith.mulf %88, %90 : vector<8x8xf32>
    %92 = vector.extract_strided_slice %21 {offsets = [24, 0], sizes = [8, 32], strides = [1, 1]} : vector<32x32xf32> to vector<8x32xf32>
    %cst_44 = arith.constant dense<0.000000e+00> : vector<8x32xf32>
    %93 = tpu.matmul %91, %92, %cst_44 {dimension_numbers = #tpu.dot_dimension_numbers<[1], [0], [0], [1], [0, 0, 1, 1], [], []>} : vector<8x8xf32>, vector<8x32xf32>, vector<8x32xf32> -> vector<8x32xf32>
    %94 = arith.addf %76, %93 : vector<8x32xf32>
    %c0_45 = arith.constant 0 : index
    %c0_46 = arith.constant 0 : index
    %95 = vector.load %arg12[%c0_45, %c0_46] : memref<1x32xf32, #tpu.memory_space<vmem>>, vector<1x32xf32>
    %96 = vector.broadcast %95 : vector<1x32xf32> to vector<8x32xf32>
    %97 = arith.addf %94, %96 : vector<8x32xf32>
    %c0_47 = arith.constant 0 : index
    %c0_48 = arith.constant 0 : index
    %c0_49 = arith.constant 0 : index
    %98 = vector.load %arg13[%c0_47, %c0_48, %c0_49] : memref<1x8x32xf32, #tpu.memory_space<vmem>>, vector<1x8x32xf32>
    %99 = vector.shape_cast %98 : vector<1x8x32xf32> to vector<8x32xf32>
    %100 = vector.shape_cast %97 : vector<8x32xf32> to vector<1x8x32xf32>
    tpu.vector_store %arg13[%c0_47, %c0_48, %c0_49], %100 {strides = array<i32>} : memref<1x8x32xf32, #tpu.memory_space<vmem>>, vector<1x8x32xf32>,
    return
  }
  func.func @transform_0(%arg0: i32, %arg1: i32) -> (i32, i32, i32) {
    %c0_i32 = arith.constant 0 : i32
    %c0_i32_0 = arith.constant 0 : i32
    return %arg0, %arg1, %c0_i32 : i32, i32, i32
  }
  func.func @transform_1(%arg0: i32, %arg1: i32) -> (i32, i32, i32) {
    %c0_i32 = arith.constant 0 : i32
    %c0_i32_0 = arith.constant 0 : i32
    %c0_i32_1 = arith.constant 0 : i32
    return %arg0, %c0_i32, %c0_i32_0 : i32, i32, i32
  }
  func.func @transform_2(%arg0: i32, %arg1: i32) -> (i32, i32, i32) {
    %c0_i32 = arith.constant 0 : i32
    %c0_i32_0 = arith.constant 0 : i32
    %c0_i32_1 = arith.constant 0 : i32
    return %arg0, %c0_i32, %c0_i32_0 : i32, i32, i32
  }
  func.func @transform_3(%arg0: i32, %arg1: i32) -> (i32, i32) {
    %c0_i32 = arith.constant 0 : i32
    %c0_i32_0 = arith.constant 0 : i32
    %c0_i32_1 = arith.constant 0 : i32
    return %c0_i32, %c0_i32_0 : i32, i32
  }
  func.func @transform_4(%arg0: i32, %arg1: i32) -> (i32, i32) {
    %c0_i32 = arith.constant 0 : i32
    %c0_i32_0 = arith.constant 0 : i32
    %c0_i32_1 = arith.constant 0 : i32
    return %c0_i32, %c0_i32_0 : i32, i32
  }
  func.func @transform_5(%arg0: i32, %arg1: i32) -> (i32, i32) {
    %c0_i32 = arith.constant 0 : i32
    %c0_i32_0 = arith.constant 0 : i32
    %c0_i32_1 = arith.constant 0 : i32
    return %c0_i32, %c0_i32_0 : i32, i32
  }
  func.func @transform_6(%arg0: i32, %arg1: i32) -> (i32, i32) {
    %c0_i32 = arith.constant 0 : i32
    %c0_i32_0 = arith.constant 0 : i32
    %c0_i32_1 = arith.constant 0 : i32
    return %c0_i32, %c0_i32_0 : i32, i32
  }
  func.func @transform_7(%arg0: i32, %arg1: i32) -> (i32, i32) {
    %c0_i32 = arith.constant 0 : i32
    %c0_i32_0 = arith.constant 0 : i32
    %c0_i32_1 = arith.constant 0 : i32
    return %c0_i32, %c0_i32_0 : i32, i32
  }
  func.func @transform_8(%arg0: i32, %arg1: i32) -> (i32, i32) {
    %c0_i32 = arith.constant 0 : i32
    %c0_i32_0 = arith.constant 0 : i32
    %c0_i32_1 = arith.constant 0 : i32
    return %c0_i32, %c0_i32_0 : i32, i32
  }
  func.func @transform_9(%arg0: i32, %arg1: i32) -> (i32, i32) {
    %c0_i32 = arith.constant 0 : i32
    %c0_i32_0 = arith.constant 0 : i32
    %c0_i32_1 = arith.constant 0 : i32
    return %c0_i32, %c0_i32_0 : i32, i32
  }
  func.func @transform_10(%arg0: i32, %arg1: i32) -> (i32, i32) {
    %c0_i32 = arith.constant 0 : i32
    %c0_i32_0 = arith.constant 0 : i32
    %c0_i32_1 = arith.constant 0 : i32
    return %c0_i32, %c0_i32_0 : i32, i32
  }
  func.func @transform_11(%arg0: i32, %arg1: i32) -> (i32, i32, i32) {
    %c0_i32 = arith.constant 0 : i32
    %c0_i32_0 = arith.constant 0 : i32
    return %arg0, %arg1, %c0_i32 : i32, i32, i32
  }
}

</mosaic_0001>

<llo_original>
// kernel: tpu_custom_call.1
$region0: #{tpu_custom_call.1}
  #allocation0 [shape = 'u32[]', space=smem, size = 0x4, offset = 0x4, fixed_abs, tag = 'smem constant byte address 0x4 - core index']
  #allocation1 [shape = 'u32[144,128]{1,0:T(1,128)}', space=vmem, size = 0x12000, scoped, tag = 'internal scratch']
  %s0 = inlined_call_operand.hbm [shape: f32[2,8,32], index: 0, kind: input, shape index: {}]
  %s1 = inlined_call_operand.hbm [shape: f32[2,8,32], index: 1, kind: input, shape index: {}]
  %s2 = inlined_call_operand.hbm [shape: f32[2,8,32], index: 2, kind: input, shape index: {}]
  %s3 = inlined_call_operand.hbm [shape: f32[32,32], index: 3, kind: input, shape index: {}]
  %s4 = inlined_call_operand.vmem [shape: f32[1,32], index: 4, kind: input, shape index: {}]
  %s5 = inlined_call_operand.hbm [shape: f32[32,32], index: 5, kind: input, shape index: {}]
  %s6 = inlined_call_operand.vmem [shape: f32[1,32], index: 6, kind: input, shape index: {}]
  %s7 = inlined_call_operand.hbm [shape: f32[32,32], index: 7, kind: input, shape index: {}]
  %s8 = inlined_call_operand.hbm [shape: f32[1,32], index: 8, kind: input, shape index: {}]
  %s9 = inlined_call_operand.vmem [shape: f32[32,32], index: 9, kind: input, shape index: {}]
  %s10 = inlined_call_operand.vmem [shape: f32[1,32], index: 10, kind: input, shape index: {}]
  %s11 = inlined_call_operand.hbm [shape: f32[2,8,32], index: 11, kind: output, shape index: {}]
  %s12 = sld [smem:[#allocation0]]
  $region105: #{tpu_custom_call.1} parent=0
    _
  %s14 = ssub.s32 1, %s12
  %s15 = scalar_select 0, %s14, %s12
  $region1: #{tpu_custom_call.1} parent=0
    #allocation2 [shape = 'u8[8192]{0}', space=vmem, size = 0x2000, scoped, tag = 'input window, operand 0']
    #allocation3 [shape = 's32[2]{0}', space=sflag, size = 0x8, scoped, tag = 'scoped memory for tpu_custom_call.1']
    #allocation4 [shape = 's32[2]{0}', space=sflag, size = 0x8, scoped, tag = 'scoped memory for tpu_custom_call.1']
    #allocation5 [shape = 'u8[8192]{0}', space=vmem, size = 0x2000, scoped, tag = 'input window, operand 1']
    #allocation6 [shape = 's32[2]{0}', space=sflag, size = 0x8, scoped, tag = 'scoped memory for tpu_custom_call.1']
    #allocation7 [shape = 'u8[8192]{0}', space=vmem, size = 0x2000, scoped, tag = 'input window, operand 2']
    #allocation8 [shape = 'u8[16384]{0}', space=vmem, size = 0x4000, scoped, tag = 'input window, operand 3, single buffered']
    #allocation9 [shape = 's32[1]{0}', space=sflag, size = 0x4, scoped, tag = 'scoped memory for tpu_custom_call.1']
    #allocation10 [shape = 'u8[16384]{0}', space=vmem, size = 0x4000, scoped, tag = 'input window, operand 5, single buffered']
    #allocation11 [shape = 'u8[16384]{0}', space=vmem, size = 0x4000, scoped, tag = 'input window, operand 7, single buffered']
    #allocation12 [shape = 's32[1]{0}', space=sflag, size = 0x4, scoped, tag = 'scoped memory for tpu_custom_call.1']
    #allocation13 [shape = 'u8[512]{0}', space=vmem, size = 0x400, scoped, tag = 'input window, operand 8, single buffered']
    #allocation14 [shape = 'u8[8192]{0}', space=vmem, size = 0x2000, scoped, tag = 'output window, operand 0']
    %16 = vsyncpa [#allocation3], 0
    %s17 = scalar_lea.sflag [#allocation3], 1
    %18 = vsyncpa %s17, 0
    %19 = vsyncpa [#allocation6], 0
    %s20 = scalar_lea.sflag [#allocation6], 1
    %21 = vsyncpa %s20, 0
    %22 = vsyncpa [#allocation9], 0
    %23 = vsyncpa [#allocation12], 0
    %24 = vsyncpa [#allocation4], 0
    %s25 = scalar_lea.sflag [#allocation4], 1
    %26 = vsyncpa %s25, 0
    loop: start=0, step=1, limit=4
    $region2: #{tpu_custom_call.1} parent=1 // loop_pre_header
      _
    $region3: #{tpu_custom_call.1} parent=1 // loop_header
      %s28 = sphi 0, %s32
      %p29 = scmp.ge.s32.totalorder %s28, 4
      %s35 = sphi 0, %s47
      %s36 = sphi 0, %s43
      %s37 = sphi 0, %s35
      %s38 = sphi 0, %s36
      %s39 = sphi 0, %s37
      %s40 = sphi 0, %s38
      %s52 = sphi 0, %s54
      %s55 = sphi 0, %s52
      %s56 = sphi 0, %s55
      %s72 = sphi 0, %s56
      %s78 = sphi 0, %s80
      %s81 = sphi 0, %s78
      %s82 = sphi 0, %s81
      %s98 = sphi 0, %s82
      %s104 = sphi 0, %s106
      %s107 = sphi 0, %s104
      %s108 = sphi 0, %s107
      %s124 = sphi 0, %s108
      %s128 = sphi 0, %s128
      %s130 = sphi 0, %s128
      %s131 = sphi 0, %s130
      %s145 = sphi 0, %s131
      %s149 = sphi 0, %s149
      %s151 = sphi 0, %s149
      %s152 = sphi 0, %s151
      %s166 = sphi 0, %s152
      %s170 = sphi 0, %s170
      %s172 = sphi 0, %s170
      %s173 = sphi 0, %s172
      %s187 = sphi 0, %s173
      %s191 = sphi 0, %s191
      %s193 = sphi 0, %s191
      %s194 = sphi 0, %s193
      %s208 = sphi 0, %s194
      %s212 = sphi 0, %s212
      %s214 = sphi 0, %s212
      %s215 = sphi 0, %s214
      %s229 = sphi 0, %s215
      %s233 = sphi 0, %s233
      %s235 = sphi 0, %s233
      %s236 = sphi 0, %s235
      %s250 = sphi 0, %s236
      %s254 = sphi 0, %s254
      %s256 = sphi 0, %s254
      %s257 = sphi 0, %s256
      %s271 = sphi 0, %s257
      %s275 = sphi 0, %s275
      %s277 = sphi 0, %s275
      %s278 = sphi 0, %s277
      %s292 = sphi 0, %s278
      %s300 = sphi 0, %s302
      %s303 = sphi 0, %s300
      %s304 = sphi 0, %s303
      %s320 = sphi 0, %s304
    $region4: #{tpu_custom_call.1} parent=1 // loop_header_branch
      %31 = sbr.rel (%p29) target = $region8
    $region5: #{tpu_custom_call.1} parent=1 // loop_body
      %s33 = ssub.s32 %s28, 1
      %s34 = ssub.s32 %s28, 2
      %s41 = sadd.s32 1, %s36
      %p42 = scmp.ge.s32.totalorder %s41, 1
      %s43 = scalar_select %p42, 0, %s41
      %s44 = sadd.s32 1, %s35
      %s45 = scalar_select %p42, %s44, %s35
      %p46 = scmp.ge.s32.totalorder %s45, 2
      %s47 = scalar_select %p46, 0, %s45
      %s48 = ssub.s32 %s35, %s47
      %s49 = ssub.s32 %s36, %s43
      %s50 = sor.u32 %s48, %s49
      %p51 = scmp.eq.s32.totalorder %s50, 0
      %s53 = sadd.s32 %s52, 1
      %s54 = scalar_select %p51, %s52, %s53
      %p57 = pneg %p51
      %p58 = scmp.eq.s32.totalorder %s28, 1
      %p59 = por %p57, %p58
      %p60 = scmp.ne.s32.totalorder %s52, %s55
      %p61 = scmp.eq.s32.totalorder %s28, 0
      %p62 = por %p60, %p61
      %p63 = scmp.ne.s32.totalorder %s52, %s55
      %p64 = scmp.eq.s32.totalorder %s33, 1
      %p65 = por %p63, %p64
      %p66 = scmp.ne.s32.totalorder %s55, %s56
      %p67 = scmp.eq.s32.totalorder %s33, 0
      %p68 = por %p66, %p67
      %p69 = scmp.ne.s32.totalorder %s55, %s56
      %p70 = scmp.eq.s32.totalorder %s34, 1
      %p71 = por %p69, %p70
      %p73 = scmp.ne.s32.totalorder %s56, %s72
      %p74 = scmp.eq.s32.totalorder %s34, 0
      %p75 = por %p73, %p74
      %s76 = ssub.s32 %s35, %s47
      %p77 = scmp.eq.s32.totalorder %s76, 0
      %s79 = sadd.s32 %s78, 1
      %s80 = scalar_select %p77, %s78, %s79
      %p83 = pneg %p77
      %p84 = scmp.eq.s32.totalorder %s28, 1
      %p85 = por %p83, %p84
      %p86 = scmp.ne.s32.totalorder %s78, %s81
      %p87 = scmp.eq.s32.totalorder %s28, 0
      %p88 = por %p86, %p87
      %p89 = scmp.ne.s32.totalorder %s78, %s81
      %p90 = scmp.eq.s32.totalorder %s33, 1
      %p91 = por %p89, %p90
      %p92 = scmp.ne.s32.totalorder %s81, %s82
      %p93 = scmp.eq.s32.totalorder %s33, 0
      %p94 = por %p92, %p93
      %p95 = scmp.ne.s32.totalorder %s81, %s82
      %p96 = scmp.eq.s32.totalorder %s34, 1
      %p97 = por %p95, %p96
      %p99 = scmp.ne.s32.totalorder %s82, %s98
      %p100 = scmp.eq.s32.totalorder %s34, 0
      %p101 = por %p99, %p100
      %s102 = ssub.s32 %s35, %s47
      %p103 = scmp.eq.s32.totalorder %s102, 0
      %s105 = sadd.s32 %s104, 1
      %s106 = scalar_select %p103, %s104, %s105
      %p109 = pneg %p103
      %p110 = scmp.eq.s32.totalorder %s28, 1
      %p111 = por %p109, %p110
      %p112 = scmp.ne.s32.totalorder %s104, %s107
      %p113 = scmp.eq.s32.totalorder %s28, 0
      %p114 = por %p112, %p113
      %p115 = scmp.ne.s32.totalorder %s104, %s107
      %p116 = scmp.eq.s32.totalorder %s33, 1
      %p117 = por %p115, %p116
      %p118 = scmp.ne.s32.totalorder %s107, %s108
      %p119 = scmp.eq.s32.totalorder %s33, 0
      %p120 = por %p118, %p119
      %p121 = scmp.ne.s32.totalorder %s107, %s108
      %p122 = scmp.eq.s32.totalorder %s34, 1
      %p123 = por %p121, %p122
      %p125 = scmp.ne.s32.totalorder %s108, %s124
      %p126 = scmp.eq.s32.totalorder %s34, 0
      %p127 = por %p125, %p126
      %s129 = sadd.s32 %s128, 1
      %p132 = scmp.eq.s32.totalorder %s28, 1
      %p133 = scmp.ne.s32.totalorder %s128, %s130
      %p134 = scmp.eq.s32.totalorder %s28, 0
      %p135 = por %p133, %p134
      %p136 = scmp.ne.s32.totalorder %s128, %s130
      %p137 = scmp.eq.s32.totalorder %s33, 1
      %p138 = por %p136, %p137
      %p139 = scmp.ne.s32.totalorder %s130, %s131
      %p140 = scmp.eq.s32.totalorder %s33, 0
      %p141 = por %p139, %p140
      %p142 = scmp.ne.s32.totalorder %s130, %s131
      %p143 = scmp.eq.s32.totalorder %s34, 1
      %p144 = por %p142, %p143
      %p146 = scmp.ne.s32.totalorder %s131, %s145
      %p147 = scmp.eq.s32.totalorder %s34, 0
      %p148 = por %p146, %p147
      %s150 = sadd.s32 %s149, 1
      %p153 = scmp.eq.s32.totalorder %s28, 1
      %p154 = scmp.ne.s32.totalorder %s149, %s151
      %p155 = scmp.eq.s32.totalorder %s28, 0
      %p156 = por %p154, %p155
      %p157 = scmp.ne.s32.totalorder %s149, %s151
      %p158 = scmp.eq.s32.totalorder %s33, 1
      %p159 = por %p157, %p158
      %p160 = scmp.ne.s32.totalorder %s151, %s152
      %p161 = scmp.eq.s32.totalorder %s33, 0
      %p162 = por %p160, %p161
      %p163 = scmp.ne.s32.totalorder %s151, %s152
      %p164 = scmp.eq.s32.totalorder %s34, 1
      %p165 = por %p163, %p164
      %p167 = scmp.ne.s32.totalorder %s152, %s166
      %p168 = scmp.eq.s32.totalorder %s34, 0
      %p169 = por %p167, %p168
      %s171 = sadd.s32 %s170, 1
      %p174 = scmp.eq.s32.totalorder %s28, 1
      %p175 = scmp.ne.s32.totalorder %s170, %s172
      %p176 = scmp.eq.s32.totalorder %s28, 0
      %p177 = por %p175, %p176
      %p178 = scmp.ne.s32.totalorder %s170, %s172
      %p179 = scmp.eq.s32.totalorder %s33, 1
      %p180 = por %p178, %p179
      %p181 = scmp.ne.s32.totalorder %s172, %s173
      %p182 = scmp.eq.s32.totalorder %s33, 0
      %p183 = por %p181, %p182
      %p184 = scmp.ne.s32.totalorder %s172, %s173
      %p185 = scmp.eq.s32.totalorder %s34, 1
      %p186 = por %p184, %p185
      %p188 = scmp.ne.s32.totalorder %s173, %s187
      %p189 = scmp.eq.s32.totalorder %s34, 0
      %p190 = por %p188, %p189
      %s192 = sadd.s32 %s191, 1
      %p195 = scmp.eq.s32.totalorder %s28, 1
      %p196 = scmp.ne.s32.totalorder %s191, %s193
      %p197 = scmp.eq.s32.totalorder %s28, 0
      %p198 = por %p196, %p197
      %p199 = scmp.ne.s32.totalorder %s191, %s193
      %p200 = scmp.eq.s32.totalorder %s33, 1
      %p201 = por %p199, %p200
      %p202 = scmp.ne.s32.totalorder %s193, %s194
      %p203 = scmp.eq.s32.totalorder %s33, 0
      %p204 = por %p202, %p203
      %p205 = scmp.ne.s32.totalorder %s193, %s194
      %p206 = scmp.eq.s32.totalorder %s34, 1
      %p207 = por %p205, %p206
      %p209 = scmp.ne.s32.totalorder %s194, %s208
      %p210 = scmp.eq.s32.totalorder %s34, 0
      %p211 = por %p209, %p210
      %s213 = sadd.s32 %s212, 1
      %p216 = scmp.eq.s32.totalorder %s28, 1
      %p217 = scmp.ne.s32.totalorder %s212, %s214
      %p218 = scmp.eq.s32.totalorder %s28, 0
      %p219 = por %p217, %p218
      %p220 = scmp.ne.s32.totalorder %s212, %s214
      %p221 = scmp.eq.s32.totalorder %s33, 1
      %p222 = por %p220, %p221
      %p223 = scmp.ne.s32.totalorder %s214, %s215
      %p224 = scmp.eq.s32.totalorder %s33, 0
      %p225 = por %p223, %p224
      %p226 = scmp.ne.s32.totalorder %s214, %s215
      %p227 = scmp.eq.s32.totalorder %s34, 1
      %p228 = por %p226, %p227
      %p230 = scmp.ne.s32.totalorder %s215, %s229
      %p231 = scmp.eq.s32.totalorder %s34, 0
      %p232 = por %p230, %p231
      %s234 = sadd.s32 %s233, 1
      %p237 = scmp.eq.s32.totalorder %s28, 1
      %p238 = scmp.ne.s32.totalorder %s233, %s235
      %p239 = scmp.eq.s32.totalorder %s28, 0
      %p240 = por %p238, %p239
      %p241 = scmp.ne.s32.totalorder %s233, %s235
      %p242 = scmp.eq.s32.totalorder %s33, 1
      %p243 = por %p241, %p242
      %p244 = scmp.ne.s32.totalorder %s235, %s236
      %p245 = scmp.eq.s32.totalorder %s33, 0
      %p246 = por %p244, %p245
      %p247 = scmp.ne.s32.totalorder %s235, %s236
      %p248 = scmp.eq.s32.totalorder %s34, 1
      %p249 = por %p247, %p248
      %p251 = scmp.ne.s32.totalorder %s236, %s250
      %p252 = scmp.eq.s32.totalorder %s34, 0
      %p253 = por %p251, %p252
      %s255 = sadd.s32 %s254, 1
      %p258 = scmp.eq.s32.totalorder %s28, 1
      %p259 = scmp.ne.s32.totalorder %s254, %s256
      %p260 = scmp.eq.s32.totalorder %s28, 0
      %p261 = por %p259, %p260
      %p262 = scmp.ne.s32.totalorder %s254, %s256
      %p263 = scmp.eq.s32.totalorder %s33, 1
      %p264 = por %p262, %p263
      %p265 = scmp.ne.s32.totalorder %s256, %s257
      %p266 = scmp.eq.s32.totalorder %s33, 0
      %p267 = por %p265, %p266
      %p268 = scmp.ne.s32.totalorder %s256, %s257
      %p269 = scmp.eq.s32.totalorder %s34, 1
      %p270 = por %p268, %p269
      %p272 = scmp.ne.s32.totalorder %s257, %s271
      %p273 = scmp.eq.s32.totalorder %s34, 0
      %p274 = por %p272, %p273
      %s276 = sadd.s32 %s275, 1
      %p279 = scmp.eq.s32.totalorder %s28, 1
      %p280 = scmp.ne.s32.totalorder %s275, %s277
      %p281 = scmp.eq.s32.totalorder %s28, 0
      %p282 = por %p280, %p281
      %p283 = scmp.ne.s32.totalorder %s275, %s277
      %p284 = scmp.eq.s32.totalorder %s33, 1
      %p285 = por %p283, %p284
      %p286 = scmp.ne.s32.totalorder %s277, %s278
      %p287 = scmp.eq.s32.totalorder %s33, 0
      %p288 = por %p286, %p287
      %p289 = scmp.ne.s32.totalorder %s277, %s278
      %p290 = scmp.eq.s32.totalorder %s34, 1
      %p291 = por %p289, %p290
      %p293 = scmp.ne.s32.totalorder %s278, %s292
      %p294 = scmp.eq.s32.totalorder %s34, 0
      %p295 = por %p293, %p294
      %s296 = ssub.s32 %s35, %s47
      %s297 = ssub.s32 %s36, %s43
      %s298 = sor.u32 %s296, %s297
      %p299 = scmp.eq.s32.totalorder %s298, 0
      %s301 = sadd.s32 %s300, 1
      %s302 = scalar_select %p299, %s300, %s301
      %p305 = pneg %p299
      %p306 = scmp.eq.s32.totalorder %s28, 1
      %p307 = por %p305, %p306
      %p308 = scmp.ne.s32.totalorder %s300, %s303
      %p309 = scmp.eq.s32.totalorder %s28, 0
      %p310 = por %p308, %p309
      %p311 = scmp.ne.s32.totalorder %s300, %s303
      %p312 = scmp.eq.s32.totalorder %s33, 1
      %p313 = por %p311, %p312
      %p314 = scmp.ne.s32.totalorder %s303, %s304
      %p315 = scmp.eq.s32.totalorder %s33, 0
      %p316 = por %p314, %p315
      %p317 = scmp.ne.s32.totalorder %s303, %s304
      %p318 = scmp.eq.s32.totalorder %s34, 1
      %p319 = por %p317, %p318
      %p321 = scmp.ne.s32.totalorder %s304, %s320
      %p322 = scmp.eq.s32.totalorder %s34, 0
      %p323 = por %p321, %p322
      %p324 = scmp.le.s32.totalorder 1, %s28
      %p325 = scmp.lt.s32.totalorder %s28, 3
      %p326 = pnand %p324, %p325
      %p327 = pneg %p326
      // Predicated region
      $region9: #{tpu_custom_call.1} parent=5 // pred_check
        _
      $region10: #{tpu_custom_call.1} parent=5 // pred_check_branch
        %329 = sbr.rel (%p326) target = $region12
      $region11: #{tpu_custom_call.1} parent=5 // pred_region
        %s330 = ssub.s32 %s28, 1
        // Predicated region
        $region13: #{tpu_custom_call.1} parent=11 // pred_check
          %p331 = pneg %p141
        $region14: #{tpu_custom_call.1} parent=11 // pred_check_branch
          %333 = sbr.rel (%p331) target = $region16
        $region15: #{tpu_custom_call.1} parent=11 // pred_region
          %s335 = ssub.s32 512, 512
          %336 = vsyncadd [#allocation9], %s335
          %s337 = sshll.u32 [#allocation8], 4
          %s338 = int_to_ptr.vmem [resolvable:$true] %s337
          %343 = dma.hbm_to_vmem [thread:$0]  %s3, 512, %s338, [#allocation9], 128, 128, 8
        $region16: #{tpu_custom_call.1} parent=11 // pred_fallthru
          _
        // Predicated region
        $region17: #{tpu_custom_call.1} parent=11 // pred_check
          %p344 = pneg %p162
        $region18: #{tpu_custom_call.1} parent=11 // pred_check_branch
          %346 = sbr.rel (%p344) target = $region20
        $region19: #{tpu_custom_call.1} parent=11 // pred_region
          _
        $region20: #{tpu_custom_call.1} parent=11 // pred_fallthru
          _
        // Predicated region
        $region21: #{tpu_custom_call.1} parent=11 // pred_check
          %p347 = pneg %p183
        $region22: #{tpu_custom_call.1} parent=11 // pred_check_branch
          %349 = sbr.rel (%p347) target = $region24
        $region23: #{tpu_custom_call.1} parent=11 // pred_region
          %s351 = ssub.s32 512, 512
          %352 = vsyncadd [#allocation9], %s351
          %s353 = sshll.u32 [#allocation10], 4
          %s354 = int_to_ptr.vmem [resolvable:$true] %s353
          %359 = dma.hbm_to_vmem [thread:$0]  %s5, 512, %s354, [#allocation9], 128, 128, 8
        $region24: #{tpu_custom_call.1} parent=11 // pred_fallthru
          _
        // Predicated region
        $region25: #{tpu_custom_call.1} parent=11 // pred_check
          %p360 = pneg %p204
        $region26: #{tpu_custom_call.1} parent=11 // pred_check_branch
          %362 = sbr.rel (%p360) target = $region28
        $region27: #{tpu_custom_call.1} parent=11 // pred_region
          _
        $region28: #{tpu_custom_call.1} parent=11 // pred_fallthru
          _
        // Predicated region
        $region29: #{tpu_custom_call.1} parent=11 // pred_check
          %p363 = pneg %p225
        $region30: #{tpu_custom_call.1} parent=11 // pred_check_branch
          %365 = sbr.rel (%p363) target = $region32
        $region31: #{tpu_custom_call.1} parent=11 // pred_region
          %s367 = ssub.s32 512, 512
          %368 = vsyncadd [#allocation12], %s367
          %s369 = sshll.u32 [#allocation11], 4
          %s370 = int_to_ptr.vmem [resolvable:$true] %s369
          %375 = dma.hbm_to_vmem [thread:$0]  %s7, 512, %s370, [#allocation12], 128, 128, 8
        $region32: #{tpu_custom_call.1} parent=11 // pred_fallthru
          _
        // Predicated region
        $region33: #{tpu_custom_call.1} parent=11 // pred_check
          %p376 = pneg %p246
        $region34: #{tpu_custom_call.1} parent=11 // pred_check_branch
          %378 = sbr.rel (%p376) target = $region36
        $region35: #{tpu_custom_call.1} parent=11 // pred_region
          %s380 = ssub.s32 16, 16
          %381 = vsyncadd [#allocation12], %s380
          %s383 = sshll.u32 [#allocation13], 4
          %s384 = int_to_ptr.vmem [resolvable:$true] %s383
          %386 = dma.hbm_to_vmem [thread:$0]  %s8, 16, %s384, [#allocation12]
        $region36: #{tpu_custom_call.1} parent=11 // pred_fallthru
          _
        // Predicated region
        $region37: #{tpu_custom_call.1} parent=11 // pred_check
          %p387 = pneg %p267
        $region38: #{tpu_custom_call.1} parent=11 // pred_check_branch
          %389 = sbr.rel (%p387) target = $region40
        $region39: #{tpu_custom_call.1} parent=11 // pred_region
          _
        $region40: #{tpu_custom_call.1} parent=11 // pred_fallthru
          _
        // Predicated region
        $region41: #{tpu_custom_call.1} parent=11 // pred_check
          %p390 = pneg %p288
        $region42: #{tpu_custom_call.1} parent=11 // pred_check_branch
          %392 = sbr.rel (%p390) target = $region44
        $region43: #{tpu_custom_call.1} parent=11 // pred_region
          _
        $region44: #{tpu_custom_call.1} parent=11 // pred_fallthru
          _
      $region12: #{tpu_custom_call.1} parent=5 // pred_fallthru
        _
      %p393 = scmp.lt.s32.totalorder %s28, 2
      // Predicated region
      $region45: #{tpu_custom_call.1} parent=5 // pred_check
        %p394 = pneg %p393
      $region46: #{tpu_custom_call.1} parent=5 // pred_check_branch
        %396 = sbr.rel (%p394) target = $region48
      $region47: #{tpu_custom_call.1} parent=5 // pred_region
        // Predicated region
        $region49: #{tpu_custom_call.1} parent=47 // pred_check
          %p397 = pneg %p62
        $region50: #{tpu_custom_call.1} parent=47 // pred_check_branch
          %399 = sbr.rel (%p397) target = $region52
        $region51: #{tpu_custom_call.1} parent=47 // pred_region
          %s400 = sand.u32 %s52, 1
          %s401 = scalar_lea.sflag [#allocation3], %s400
          %s402 = sand.u32 %s52, 1
          %s403 = smul.addr %s402, 8
          %s404 = scalar_lea.vmem [#allocation2], %s403
          %s406 = ssub.s32 128, 128
          %407 = vsyncadd %s401, %s406
          %s408 = sadd.s32 %s36, %s35
          %s409 = smul.addr %s408, 128
          %s410 = scalar_lea.hbm %s0, %s409
          %s412 = sshll.u32 %s404, 4
          %s413 = int_to_ptr.vmem [resolvable:$true] %s412
          %415 = dma.hbm_to_vmem [thread:$0]  %s410, 128, %s413, %s401
        $region52: #{tpu_custom_call.1} parent=47 // pred_fallthru
          _
        // Predicated region
        $region53: #{tpu_custom_call.1} parent=47 // pred_check
          %p416 = pneg %p88
        $region54: #{tpu_custom_call.1} parent=47 // pred_check_branch
          %418 = sbr.rel (%p416) target = $region56
        $region55: #{tpu_custom_call.1} parent=47 // pred_region
          %s419 = sand.u32 %s28, 1
          %s420 = scalar_lea.sflag [#allocation6], %s419
          %s421 = sand.u32 %s78, 1
          %s422 = smul.addr %s421, 8
          %s423 = scalar_lea.vmem [#allocation5], %s422
          %s425 = ssub.s32 128, 128
          %426 = vsyncadd %s420, %s425
          %s427 = smul.addr %s35, 128
          %s428 = scalar_lea.hbm %s1, %s427
          %s430 = sshll.u32 %s423, 4
          %s431 = int_to_ptr.vmem [resolvable:$true] %s430
          %433 = dma.hbm_to_vmem [thread:$0]  %s428, 128, %s431, %s420
        $region56: #{tpu_custom_call.1} parent=47 // pred_fallthru
          _
        // Predicated region
        $region57: #{tpu_custom_call.1} parent=47 // pred_check
          %p434 = pneg %p114
        $region58: #{tpu_custom_call.1} parent=47 // pred_check_branch
          %436 = sbr.rel (%p434) target = $region60
        $region59: #{tpu_custom_call.1} parent=47 // pred_region
          %s437 = sand.u32 %s28, 1
          %s438 = scalar_lea.sflag [#allocation6], %s437
          %s439 = sand.u32 %s104, 1
          %s440 = smul.addr %s439, 8
          %s441 = scalar_lea.vmem [#allocation7], %s440
          %s443 = ssub.s32 128, 128
          %444 = vsyncadd %s438, %s443
          %s445 = smul.addr %s35, 128
          %s446 = scalar_lea.hbm %s2, %s445
          %s448 = sshll.u32 %s441, 4
          %s449 = int_to_ptr.vmem [resolvable:$true] %s448
          %451 = dma.hbm_to_vmem [thread:$0]  %s446, 128, %s449, %s438
        $region60: #{tpu_custom_call.1} parent=47 // pred_fallthru
          _
      $region48: #{tpu_custom_call.1} parent=5 // pred_fallthru
        _
      %p452 = scmp.le.s32.totalorder 1, %s28
      %p453 = scmp.lt.s32.totalorder %s28, 3
      %p454 = pnand %p452, %p453
      %p455 = pneg %p454
      // Predicated region
      $region61: #{tpu_custom_call.1} parent=5 // pred_check
        _
      $region62: #{tpu_custom_call.1} parent=5 // pred_check_branch
        %457 = sbr.rel (%p454) target = $region64
      $region63: #{tpu_custom_call.1} parent=5 // pred_region
        %s458 = ssub.s32 %s28, 1
        %s459 = sand.u32 %s55, 1
        %s460 = scalar_lea.sflag [#allocation3], %s459
        %s461 = sand.u32 %s55, 1
        %s462 = smul.addr %s461, 8
        %s463 = scalar_lea.vmem [#allocation2], %s462
        // Predicated region
        $region65: #{tpu_custom_call.1} parent=63 // pred_check
          %p464 = pneg %p68
        $region66: #{tpu_custom_call.1} parent=63 // pred_check_branch
          %466 = sbr.rel (%p464) target = $region68
        $region67: #{tpu_custom_call.1} parent=63 // pred_region
          %467 = dma.done %s460, 128
        $region68: #{tpu_custom_call.1} parent=63 // pred_fallthru
          _
        %s468 = sand.u32 %s33, 1
        %s469 = scalar_lea.sflag [#allocation6], %s468
        %s470 = sand.u32 %s81, 1
        %s471 = smul.addr %s470, 8
        %s472 = scalar_lea.vmem [#allocation5], %s471
        // Predicated region
        $region69: #{tpu_custom_call.1} parent=63 // pred_check
          %p473 = pneg %p94
        $region70: #{tpu_custom_call.1} parent=63 // pred_check_branch
          %475 = sbr.rel (%p473) target = $region72
        $region71: #{tpu_custom_call.1} parent=63 // pred_region
          %476 = dma.done %s469, 128
        $region72: #{tpu_custom_call.1} parent=63 // pred_fallthru
          _
        %s477 = sand.u32 %s33, 1
        %s478 = scalar_lea.sflag [#allocation6], %s477
        %s479 = sand.u32 %s107, 1
        %s480 = smul.addr %s479, 8
        %s481 = scalar_lea.vmem [#allocation7], %s480
        // Predicated region
        $region73: #{tpu_custom_call.1} parent=63 // pred_check
          %p482 = pneg %p120
        $region74: #{tpu_custom_call.1} parent=63 // pred_check_branch
          %484 = sbr.rel (%p482) target = $region76
        $region75: #{tpu_custom_call.1} parent=63 // pred_region
          %485 = dma.done %s478, 128
        $region76: #{tpu_custom_call.1} parent=63 // pred_fallthru
          _
        // Predicated region
        $region77: #{tpu_custom_call.1} parent=63 // pred_check
          %p486 = pneg %p141
        $region78: #{tpu_custom_call.1} parent=63 // pred_check_branch
          %488 = sbr.rel (%p486) target = $region80
        $region79: #{tpu_custom_call.1} parent=63 // pred_region
          %489 = dma.done [#allocation9], 512
        $region80: #{tpu_custom_call.1} parent=63 // pred_fallthru
          _
        // Predicated region
        $region81: #{tpu_custom_call.1} parent=63 // pred_check
          %p490 = pneg %p183
        $region82: #{tpu_custom_call.1} parent=63 // pred_check_branch
          %492 = sbr.rel (%p490) target = $region84
        $region83: #{tpu_custom_call.1} parent=63 // pred_region
          %493 = dma.done [#allocation9], 512
        $region84: #{tpu_custom_call.1} parent=63 // pred_fallthru
          _
        // Predicated region
        $region85: #{tpu_custom_call.1} parent=63 // pred_check
          %p494 = pneg %p225
        $region86: #{tpu_custom_call.1} parent=63 // pred_check_branch
          %496 = sbr.rel (%p494) target = $region88
        $region87: #{tpu_custom_call.1} parent=63 // pred_region
          %497 = dma.done [#allocation12], 512
        $region88: #{tpu_custom_call.1} parent=63 // pred_fallthru
          _
        // Predicated region
        $region89: #{tpu_custom_call.1} parent=63 // pred_check
          %p498 = pneg %p246
        $region90: #{tpu_custom_call.1} parent=63 // pred_check_branch
          %500 = sbr.rel (%p498) target = $region92
        $region91: #{tpu_custom_call.1} parent=63 // pred_region
          %501 = dma.done [#allocation12], 16
        $region92: #{tpu_custom_call.1} parent=63 // pred_fallthru
          _
        %s502 = sand.u32 %s55, 1
        %s503 = scalar_lea.sflag [#allocation3], %s502
        %s504 = sand.u32 %s55, 1
        %s505 = smul.addr %s504, 8
        %s506 = scalar_lea.vmem [#allocation2], %s505
        %p507 = pneg %p68
        %p508 = pneg %p65
        %s509 = sand.u32 %s33, 1
        %s510 = scalar_lea.sflag [#allocation6], %s509
        %s511 = sand.u32 %s81, 1
        %s512 = smul.addr %s511, 8
        %s513 = scalar_lea.vmem [#allocation5], %s512
        %p514 = pneg %p94
        %p515 = pneg %p91
        %s516 = sand.u32 %s33, 1
        %s517 = scalar_lea.sflag [#allocation6], %s516
        %s518 = sand.u32 %s107, 1
        %s519 = smul.addr %s518, 8
        %s520 = scalar_lea.vmem [#allocation7], %s519
        %p521 = pneg %p120
        %p522 = pneg %p117
        %p523 = pneg %p141
        %p524 = pneg %p138
        %p525 = pneg %p162
        %p526 = pneg %p159
        %p527 = pneg %p183
        %p528 = pneg %p180
        %p529 = pneg %p204
        %p530 = pneg %p201
        %p531 = pneg %p225
        %p532 = pneg %p222
        %p533 = pneg %p246
        %p534 = pneg %p243
        %p535 = pneg %p267
        %p536 = pneg %p264
        %p537 = pneg %p288
        %p538 = pneg %p285
        %p539 = pneg %p316
        %p540 = pneg %p313
        %s541 = sand.u32 %s303, 1
        %s542 = scalar_lea.sflag [#allocation4], %s541
        %s543 = sand.u32 %s303, 1
        %s544 = smul.addr %s543, 8
        %s545 = scalar_lea.vmem [#allocation14], %s544
        %v546 = vld [vmem:[%s463] sm:$0xff]
        %v547 = vld [vmem:[%s472] sm:$0xff]
        %v548 = vld [vmem:[%s481] sm:$0xff]
        %v549 = vld [vmem:[#allocation8] sm:$0xff]
        %v550 = vld [vmem:[#allocation8 + $0x8] sm:$0xff]
        %v551 = vld [vmem:[#allocation8 + $0x10] sm:$0xff]
        %v552 = vld [vmem:[#allocation8 + $0x18] sm:$0xff]
        %v553 = vld [vmem:[%s4] sm:$0x1]
        %v555 = vlaneseq
        %v556 = vshrl.u32 %v555, 7
        %v557 = vsub.s32 0, %v556
        %v558 = vrot.slane %v553, %v557
        %vm560 = vcmask 261120
        %v562 = vsel %vm560, %v546, 0
        %564 = vmatprep.subr.mxu0 0.0
        %565 = vmatpush1.msra.mxu0 %v549
        %566 = vmatprep.subr.mxu0 0.0
        %567 = vmatpush1.msra.mxu0 %v550
        %568 = vmatprep.subr.mxu0 0.0
        %569 = vmatpush1.msra.mxu0 %v551
        %570 = vmatprep.subr.mxu0 0.0
        %571 = vmatpush1.msra.mxu0 %v552
        %572 = vmatprep.subr.mxu0 0.0
        %573 = vmatpush1.msra.mxu0 0.0
        %574 = vmatprep.subr.mxu0 0.0
        %575 = vmatpush1.msra.mxu0 0.0
        %576 = vmatprep.subr.mxu0 0.0
        %577 = vmatpush1.msra.mxu0 0.0
        %578 = vmatprep.subr.mxu0 0.0
        %579 = vmatpush1.msra.mxu0 0.0
        %580 = vmatprep.subr.mxu0 0.0
        %581 = vmatpush1.msra.mxu0 0.0
        %582 = vmatprep.subr.mxu0 0.0
        %583 = vmatpush1.msra.mxu0 0.0
        %584 = vmatprep.subr.mxu0 0.0
        %585 = vmatpush1.msra.mxu0 0.0
        %586 = vmatprep.subr.mxu0 0.0
        %587 = vmatpush1.msra.mxu0 0.0
        %588 = vmatprep.subr.mxu0 0.0
        %589 = vmatpush1.msra.mxu0 0.0
        %590 = vmatprep.subr.mxu0 0.0
        %591 = vmatpush1.msra.mxu0 0.0
        %592 = vmatprep.subr.mxu0 0.0
        %593 = vmatpush1.msra.mxu0 0.0
        %594 = vmatprep.subr.mxu0 0.0
        %595 = vmatpush1.msra.mxu0 0.0
        %596 = vmatprep.subr.mxu0 0.0
        %597 = vmatpush1.msra.mxu0 0.0
        %598 = vmatprep.subr.mxu0 0.0
        %599 = vmatpush1.msra.mxu0 0.0
        %600 = vmatprep.subr.mxu0 0.0
        %601 = vmatpush1.msra.mxu0 0.0
        %602 = vmatprep.subr.mxu0 0.0
        %603 = vmatpush1.msra.mxu0 0.0
        %604 = vmatprep.subr.mxu0 0.0
        %605 = vmatpush1.msra.mxu0 0.0
        %606 = vmatprep.subr.mxu0 0.0
        %607 = vmatpush1.msra.mxu0 0.0
        %608 = vmatprep.subr.mxu0 0.0
        %609 = vmatpush1.msra.mxu0 0.0
        %610 = vmatprep.subr.mxu0 0.0
        %611 = vmatpush1.msra.mxu0 0.0
        %612 = vmatprep.subr.mxu0 0.0
        %613 = vmatpush1.msra.mxu0 0.0
        %614 = vmatprep.subr.mxu0 0.0
        %615 = vmatpush1.msra.mxu0 0.0
        %616 = vmatprep.subr.mxu0 0.0
        %617 = vmatpush1.msra.mxu0 0.0
        %618 = vmatprep.subr.mxu0 0.0
        %619 = vmatpush1.msra.mxu0 0.0
        %620 = vmatprep.subr.mxu0 0.0
        %621 = vmatpush1.msra.mxu0 0.0
        %622 = vmatprep.subr.mxu0 0.0
        %623 = vmatpush1.msra.mxu0 0.0
        %624 = vmatprep.subr.mxu0 0.0
        %625 = vmatpush1.msra.mxu0 0.0
        %626 = vmatprep.subr.mxu0 0.0
        %627 = vmatpush1.msra.mxu0 0.0
        %628 = vmatprep.mubr.f32.mxu0 0.0
        %629 = vmatmul.mubr.f32.gmra.mrb[0].mxu0 %v562
        %v630 = vpop.f32.mrb[0].mxu0
        %v631 = vadd.f32 %v558, %v630
        %v632 = vpop.f32.mrb[0].mxu0
        %633 = vdwg.mxu0
        %v634 = vld [vmem:[#allocation10] sm:$0xff]
        %v635 = vld [vmem:[#allocation10 + $0x8] sm:$0xff]
        %v636 = vld [vmem:[#allocation10 + $0x10] sm:$0xff]
        %v637 = vld [vmem:[#allocation10 + $0x18] sm:$0xff]
        %v638 = vld [vmem:[%s6] sm:$0x1]
        %v640 = vlaneseq
        %v641 = vshrl.u32 %v640, 7
        %v642 = vsub.s32 0, %v641
        %v643 = vrot.slane %v638, %v642
        %v646 = vsel %vm560, %v547, 0
        %648 = vmatprep.subr.mxu0 0.0
        %649 = vmatpush1.msra.mxu0 %v634
        %650 = vmatprep.subr.mxu0 0.0
        %651 = vmatpush1.msra.mxu0 %v635
        %652 = vmatprep.subr.mxu0 0.0
        %653 = vmatpush1.msra.mxu0 %v636
        %654 = vmatprep.subr.mxu0 0.0
        %655 = vmatpush1.msra.mxu0 %v637
        %656 = vmatprep.subr.mxu0 0.0
        %657 = vmatpush1.msra.mxu0 0.0
        %658 = vmatprep.subr.mxu0 0.0
        %659 = vmatpush1.msra.mxu0 0.0
        %660 = vmatprep.subr.mxu0 0.0
        %661 = vmatpush1.msra.mxu0 0.0
        %662 = vmatprep.subr.mxu0 0.0
        %663 = vmatpush1.msra.mxu0 0.0
        %664 = vmatprep.subr.mxu0 0.0
        %665 = vmatpush1.msra.mxu0 0.0
        %666 = vmatprep.subr.mxu0 0.0
        %667 = vmatpush1.msra.mxu0 0.0
        %668 = vmatprep.subr.mxu0 0.0
        %669 = vmatpush1.msra.mxu0 0.0
        %670 = vmatprep.subr.mxu0 0.0
        %671 = vmatpush1.msra.mxu0 0.0
        %672 = vmatprep.subr.mxu0 0.0
        %673 = vmatpush1.msra.mxu0 0.0
        %674 = vmatprep.subr.mxu0 0.0
        %675 = vmatpush1.msra.mxu0 0.0
        %676 = vmatprep.subr.mxu0 0.0
        %677 = vmatpush1.msra.mxu0 0.0
        %678 = vmatprep.subr.mxu0 0.0
        %679 = vmatpush1.msra.mxu0 0.0
        %680 = vmatprep.subr.mxu0 0.0
        %681 = vmatpush1.msra.mxu0 0.0
        %682 = vmatprep.subr.mxu0 0.0
        %683 = vmatpush1.msra.mxu0 0.0
        %684 = vmatprep.subr.mxu0 0.0
        %685 = vmatpush1.msra.mxu0 0.0
        %686 = vmatprep.subr.mxu0 0.0
        %687 = vmatpush1.msra.mxu0 0.0
        %688 = vmatprep.subr.mxu0 0.0
        %689 = vmatpush1.msra.mxu0 0.0
        %690 = vmatprep.subr.mxu0 0.0
        %691 = vmatpush1.msra.mxu0 0.0
        %692 = vmatprep.subr.mxu0 0.0
        %693 = vmatpush1.msra.mxu0 0.0
        %694 = vmatprep.subr.mxu0 0.0
        %695 = vmatpush1.msra.mxu0 0.0
        %696 = vmatprep.subr.mxu0 0.0
        %697 = vmatpush1.msra.mxu0 0.0
        %698 = vmatprep.subr.mxu0 0.0
        %699 = vmatpush1.msra.mxu0 0.0
        %700 = vmatprep.subr.mxu0 0.0
        %701 = vmatpush1.msra.mxu0 0.0
        %702 = vmatprep.subr.mxu0 0.0
        %703 = vmatpush1.msra.mxu0 0.0
        %704 = vmatprep.subr.mxu0 0.0
        %705 = vmatpush1.msra.mxu0 0.0
        %706 = vmatprep.subr.mxu0 0.0
        %707 = vmatpush1.msra.mxu0 0.0
        %708 = vmatprep.subr.mxu0 0.0
        %709 = vmatpush1.msra.mxu0 0.0
        %710 = vmatprep.subr.mxu0 0.0
        %711 = vmatpush1.msra.mxu0 0.0
        %712 = vmatprep.mubr.f32.mxu0 0.0
        %713 = vmatmul.mubr.f32.gmra.mrb[0].mxu0 %v646
        %v714 = vpop.f32.mrb[0].mxu0
        %v715 = vadd.f32 %v643, %v714
        %v716 = vpop.f32.mrb[0].mxu0
        %717 = vdwg.mxu0
        %v718 = vld [vmem:[#allocation11] sm:$0xff]
        %v719 = vld [vmem:[#allocation11 + $0x8] sm:$0xff]
        %v720 = vld [vmem:[#allocation11 + $0x10] sm:$0xff]
        %v721 = vld [vmem:[#allocation11 + $0x18] sm:$0xff]
        %v722 = vld [vmem:[#allocation13] sm:$0x1]
        %v724 = vlaneseq
        %v725 = vshrl.u32 %v724, 7
        %v726 = vsub.s32 0, %v725
        %v727 = vrot.slane %v722, %v726
        %v730 = vsel %vm560, %v548, 0
        %732 = vmatprep.subr.mxu0 0.0
        %733 = vmatpush1.msra.mxu0 %v718
        %734 = vmatprep.subr.mxu0 0.0
        %735 = vmatpush1.msra.mxu0 %v719
        %736 = vmatprep.subr.mxu0 0.0
        %737 = vmatpush1.msra.mxu0 %v720
        %738 = vmatprep.subr.mxu0 0.0
        %739 = vmatpush1.msra.mxu0 %v721
        %740 = vmatprep.subr.mxu0 0.0
        %741 = vmatpush1.msra.mxu0 0.0
        %742 = vmatprep.subr.mxu0 0.0
        %743 = vmatpush1.msra.mxu0 0.0
        %744 = vmatprep.subr.mxu0 0.0
        %745 = vmatpush1.msra.mxu0 0.0
        %746 = vmatprep.subr.mxu0 0.0
        %747 = vmatpush1.msra.mxu0 0.0
        %748 = vmatprep.subr.mxu0 0.0
        %749 = vmatpush1.msra.mxu0 0.0
        %750 = vmatprep.subr.mxu0 0.0
        %751 = vmatpush1.msra.mxu0 0.0
        %752 = vmatprep.subr.mxu0 0.0
        %753 = vmatpush1.msra.mxu0 0.0
        %754 = vmatprep.subr.mxu0 0.0
        %755 = vmatpush1.msra.mxu0 0.0
        %756 = vmatprep.subr.mxu0 0.0
        %757 = vmatpush1.msra.mxu0 0.0
        %758 = vmatprep.subr.mxu0 0.0
        %759 = vmatpush1.msra.mxu0 0.0
        %760 = vmatprep.subr.mxu0 0.0
        %761 = vmatpush1.msra.mxu0 0.0
        %762 = vmatprep.subr.mxu0 0.0
        %763 = vmatpush1.msra.mxu0 0.0
        %764 = vmatprep.subr.mxu0 0.0
        %765 = vmatpush1.msra.mxu0 0.0
        %766 = vmatprep.subr.mxu0 0.0
        %767 = vmatpush1.msra.mxu0 0.0
        %768 = vmatprep.subr.mxu0 0.0
        %769 = vmatpush1.msra.mxu0 0.0
        %770 = vmatprep.subr.mxu0 0.0
        %771 = vmatpush1.msra.mxu0 0.0
        %772 = vmatprep.subr.mxu0 0.0
        %773 = vmatpush1.msra.mxu0 0.0
        %774 = vmatprep.subr.mxu0 0.0
        %775 = vmatpush1.msra.mxu0 0.0
        %776 = vmatprep.subr.mxu0 0.0
        %777 = vmatpush1.msra.mxu0 0.0
        %778 = vmatprep.subr.mxu0 0.0
        %779 = vmatpush1.msra.mxu0 0.0
        %780 = vmatprep.subr.mxu0 0.0
        %781 = vmatpush1.msra.mxu0 0.0
        %782 = vmatprep.subr.mxu0 0.0
        %783 = vmatpush1.msra.mxu0 0.0
        %784 = vmatprep.subr.mxu0 0.0
        %785 = vmatpush1.msra.mxu0 0.0
        %786 = vmatprep.subr.mxu0 0.0
        %787 = vmatpush1.msra.mxu0 0.0
        %788 = vmatprep.subr.mxu0 0.0
        %789 = vmatpush1.msra.mxu0 0.0
        %790 = vmatprep.subr.mxu0 0.0
        %791 = vmatpush1.msra.mxu0 0.0
        %792 = vmatprep.subr.mxu0 0.0
        %793 = vmatpush1.msra.mxu0 0.0
        %794 = vmatprep.subr.mxu0 0.0
        %795 = vmatpush1.msra.mxu0 0.0
        %796 = vmatprep.mubr.f32.mxu0 0.0
        %797 = vmatmul.mubr.f32.gmra.mrb[0].mxu0 %v730
        %v798 = vpop.f32.mrb[0].mxu0
        %v799 = vadd.f32 %v727, %v798
        %v800 = vpop.f32.mrb[0].mxu0
        %801 = vdwg.mxu0
        %v802 = vld [vmem:[%s9] sm:$0xff]
        %v803 = vld [vmem:[%s9 + $0x8] sm:$0xff]
        %v804 = vld [vmem:[%s9 + $0x10] sm:$0xff]
        %v805 = vld [vmem:[%s9 + $0x18] sm:$0xff]
        %vm806 = vcmask 64512
        %v808 = vsel %vm806, %v631, 0
        %v811 = vsel %vm806, %v715, 0
        %813 = vmatprep.subr.mxu0 0.0
        %814 = vmatpush1.xpose.msra.mxu0 %v811
        %815 = vmatprep.subr.mxu0 0.0
        %816 = vmatpush1.xpose.msra.mxu0 0.0
        %817 = vmatprep.subr.mxu0 0.0
        %818 = vmatpush1.xpose.msra.mxu0 0.0
        %819 = vmatprep.subr.mxu0 0.0
        %820 = vmatpush1.xpose.msra.mxu0 0.0
        %821 = vmatprep.subr.mxu0 0.0
        %822 = vmatpush1.xpose.msra.mxu0 0.0
        %823 = vmatprep.subr.mxu0 0.0
        %824 = vmatpush1.xpose.msra.mxu0 0.0
        %825 = vmatprep.subr.mxu0 0.0
        %826 = vmatpush1.xpose.msra.mxu0 0.0
        %827 = vmatprep.subr.mxu0 0.0
        %828 = vmatpush1.xpose.msra.mxu0 0.0
        %829 = vmatprep.subr.mxu0 0.0
        %830 = vmatpush1.xpose.msra.mxu0 0.0
        %831 = vmatprep.subr.mxu0 0.0
        %832 = vmatpush1.xpose.msra.mxu0 0.0
        %833 = vmatprep.subr.mxu0 0.0
        %834 = vmatpush1.xpose.msra.mxu0 0.0
        %835 = vmatprep.subr.mxu0 0.0
        %836 = vmatpush1.xpose.msra.mxu0 0.0
        %837 = vmatprep.subr.mxu0 0.0
        %838 = vmatpush1.xpose.msra.mxu0 0.0
        %839 = vmatprep.subr.mxu0 0.0
        %840 = vmatpush1.xpose.msra.mxu0 0.0
        %841 = vmatprep.subr.mxu0 0.0
        %842 = vmatpush1.xpose.msra.mxu0 0.0
        %843 = vmatprep.subr.mxu0 0.0
        %844 = vmatpush1.xpose.msra.mxu0 0.0
        %845 = vmatprep.subr.mxu0 0.0
        %846 = vmatpush1.xpose.msra.mxu0 0.0
        %847 = vmatprep.subr.mxu0 0.0
        %848 = vmatpush1.xpose.msra.mxu0 0.0
        %849 = vmatprep.subr.mxu0 0.0
        %850 = vmatpush1.xpose.msra.mxu0 0.0
        %851 = vmatprep.subr.mxu0 0.0
        %852 = vmatpush1.xpose.msra.mxu0 0.0
        %853 = vmatprep.subr.mxu0 0.0
        %854 = vmatpush1.xpose.msra.mxu0 0.0
        %855 = vmatprep.subr.mxu0 0.0
        %856 = vmatpush1.xpose.msra.mxu0 0.0
        %857 = vmatprep.subr.mxu0 0.0
        %858 = vmatpush1.xpose.msra.mxu0 0.0
        %859 = vmatprep.subr.mxu0 0.0
        %860 = vmatpush1.xpose.msra.mxu0 0.0
        %861 = vmatprep.subr.mxu0 0.0
        %862 = vmatpush1.xpose.msra.mxu0 0.0
        %863 = vmatprep.subr.mxu0 0.0
        %864 = vmatpush1.xpose.msra.mxu0 0.0
        %865 = vmatprep.subr.mxu0 0.0
        %866 = vmatpush1.xpose.msra.mxu0 0.0
        %867 = vmatprep.subr.mxu0 0.0
        %868 = vmatpush1.xpose.msra.mxu0 0.0
        %869 = vmatprep.subr.mxu0 0.0
        %870 = vmatpush1.xpose.msra.mxu0 0.0
        %871 = vmatprep.subr.mxu0 0.0
        %872 = vmatpush1.xpose.msra.mxu0 0.0
        %873 = vmatprep.subr.mxu0 0.0
        %874 = vmatpush1.xpose.msra.mxu0 0.0
        %875 = vmatprep.subr.mxu0 0.0
        %876 = vmatpush1.xpose.msra.mxu0 0.0
        %877 = vmatprep.mubr.f32.mxu0 0.0
        %878 = vmatmul.mubr.f32.gmra.mrb[0].mxu0 %v808
        %v879 = vpop.f32.mrb[0].mxu0
        %v880 = vadd.f32 0.0, %v879
        %v881 = vpop.f32.mrb[0].mxu0
        %882 = vdwg.mxu0
        %v883 = vsel %vm806, %v880, -inf
        %884 = vmax.xlane.f32.xlu0 %v883
        %v885 = vpop.xlane.xlu0 %884
        %v886 = vsub.f32 %v880, %v885
        %v887 = vmul.f32 %v886, 1.442695
        %v888 = vpow.pop %v887
        %v889 = vsel %vm806, %v888, 0.0
        %890 = vadd.xlane.f32.xlu0 %v889
        %v891 = vpop.xlane.xlu0 %890
        %v893 = vsel %vm806, %v888, 0
        %895 = vmatprep.subr.mxu0 0.0
        %896 = vmatpush1.msra.mxu0 %v799
        %897 = vmatprep.subr.mxu0 0.0
        %898 = vmatpush1.msra.mxu0 0.0
        %899 = vmatprep.subr.mxu0 0.0
        %900 = vmatpush1.msra.mxu0 0.0
        %901 = vmatprep.subr.mxu0 0.0
        %902 = vmatpush1.msra.mxu0 0.0
        %903 = vmatprep.subr.mxu0 0.0
        %904 = vmatpush1.msra.mxu0 0.0
        %905 = vmatprep.subr.mxu0 0.0
        %906 = vmatpush1.msra.mxu0 0.0
        %907 = vmatprep.subr.mxu0 0.0
        %908 = vmatpush1.msra.mxu0 0.0
        %909 = vmatprep.subr.mxu0 0.0
        %910 = vmatpush1.msra.mxu0 0.0
        %911 = vmatprep.subr.mxu0 0.0
        %912 = vmatpush1.msra.mxu0 0.0
        %913 = vmatprep.subr.mxu0 0.0
        %914 = vmatpush1.msra.mxu0 0.0
        %915 = vmatprep.subr.mxu0 0.0
        %916 = vmatpush1.msra.mxu0 0.0
        %917 = vmatprep.subr.mxu0 0.0
        %918 = vmatpush1.msra.mxu0 0.0
        %919 = vmatprep.subr.mxu0 0.0
        %920 = vmatpush1.msra.mxu0 0.0
        %921 = vmatprep.subr.mxu0 0.0
        %922 = vmatpush1.msra.mxu0 0.0
        %923 = vmatprep.subr.mxu0 0.0
        %924 = vmatpush1.msra.mxu0 0.0
        %925 = vmatprep.subr.mxu0 0.0
        %926 = vmatpush1.msra.mxu0 0.0
        %927 = vmatprep.subr.mxu0 0.0
        %928 = vmatpush1.msra.mxu0 0.0
        %929 = vmatprep.subr.mxu0 0.0
        %930 = vmatpush1.msra.mxu0 0.0
        %931 = vmatprep.subr.mxu0 0.0
        %932 = vmatpush1.msra.mxu0 0.0
        %933 = vmatprep.subr.mxu0 0.0
        %934 = vmatpush1.msra.mxu0 0.0
        %935 = vmatprep.subr.mxu0 0.0
        %936 = vmatpush1.msra.mxu0 0.0
        %937 = vmatprep.subr.mxu0 0.0
        %938 = vmatpush1.msra.mxu0 0.0
        %939 = vmatprep.subr.mxu0 0.0
        %940 = vmatpush1.msra.mxu0 0.0
        %941 = vmatprep.subr.mxu0 0.0
        %942 = vmatpush1.msra.mxu0 0.0
        %943 = vmatprep.subr.mxu0 0.0
        %944 = vmatpush1.msra.mxu0 0.0
        %945 = vmatprep.subr.mxu0 0.0
        %946 = vmatpush1.msra.mxu0 0.0
        %947 = vmatprep.subr.mxu0 0.0
        %948 = vmatpush1.msra.mxu0 0.0
        %949 = vmatprep.subr.mxu0 0.0
        %950 = vmatpush1.msra.mxu0 0.0
        %951 = vmatprep.subr.mxu0 0.0
        %952 = vmatpush1.msra.mxu0 0.0
        %953 = vmatprep.subr.mxu0 0.0
        %954 = vmatpush1.msra.mxu0 0.0
        %955 = vmatprep.subr.mxu0 0.0
        %956 = vmatpush1.msra.mxu0 0.0
        %957 = vmatprep.subr.mxu0 0.0
        %958 = vmatpush1.msra.mxu0 0.0
        %959 = vmatprep.mubr.f32.mxu0 0.0
        %960 = vmatmul.mubr.f32.gmra.mrb[0].mxu0 %v893
        %v961 = vpop.f32.mrb[0].mxu0
        %v962 = vadd.f32 0.0, %v961
        %v963 = vpop.f32.mrb[0].mxu0
        %964 = vdwg.mxu0
        %v965 = vrcp.pop %v891
        %v966 = vmul.f32 %v962, %v965
        %967 = vrot.lane.b32.xlu0 %v631, 120
        %v968 = vpop.permute.xlu0 %967
        %969 = vrot.lane.b32.xlu0 %v715, 120
        %v970 = vpop.permute.xlu0 %969
        %v971 = vsel %vm806, %v968, 0
        %v973 = vsel %vm806, %v970, 0
        %975 = vmatprep.subr.mxu0 0.0
        %976 = vmatpush1.xpose.msra.mxu0 %v973
        %977 = vmatprep.subr.mxu0 0.0
        %978 = vmatpush1.xpose.msra.mxu0 0.0
        %979 = vmatprep.subr.mxu0 0.0
        %980 = vmatpush1.xpose.msra.mxu0 0.0
        %981 = vmatprep.subr.mxu0 0.0
        %982 = vmatpush1.xpose.msra.mxu0 0.0
        %983 = vmatprep.subr.mxu0 0.0
        %984 = vmatpush1.xpose.msra.mxu0 0.0
        %985 = vmatprep.subr.mxu0 0.0
        %986 = vmatpush1.xpose.msra.mxu0 0.0
        %987 = vmatprep.subr.mxu0 0.0
        %988 = vmatpush1.xpose.msra.mxu0 0.0
        %989 = vmatprep.subr.mxu0 0.0
        %990 = vmatpush1.xpose.msra.mxu0 0.0
        %991 = vmatprep.subr.mxu0 0.0
        %992 = vmatpush1.xpose.msra.mxu0 0.0
        %993 = vmatprep.subr.mxu0 0.0
        %994 = vmatpush1.xpose.msra.mxu0 0.0
        %995 = vmatprep.subr.mxu0 0.0
        %996 = vmatpush1.xpose.msra.mxu0 0.0
        %997 = vmatprep.subr.mxu0 0.0
        %998 = vmatpush1.xpose.msra.mxu0 0.0
        %999 = vmatprep.subr.mxu0 0.0
        %1000 = vmatpush1.xpose.msra.mxu0 0.0
        %1001 = vmatprep.subr.mxu0 0.0
        %1002 = vmatpush1.xpose.msra.mxu0 0.0
        %1003 = vmatprep.subr.mxu0 0.0
        %1004 = vmatpush1.xpose.msra.mxu0 0.0
        %1005 = vmatprep.subr.mxu0 0.0
        %1006 = vmatpush1.xpose.msra.mxu0 0.0
        %1007 = vmatprep.subr.mxu0 0.0
        %1008 = vmatpush1.xpose.msra.mxu0 0.0
        %1009 = vmatprep.subr.mxu0 0.0
        %1010 = vmatpush1.xpose.msra.mxu0 0.0
        %1011 = vmatprep.subr.mxu0 0.0
        %1012 = vmatpush1.xpose.msra.mxu0 0.0
        %1013 = vmatprep.subr.mxu0 0.0
        %1014 = vmatpush1.xpose.msra.mxu0 0.0
        %1015 = vmatprep.subr.mxu0 0.0
        %1016 = vmatpush1.xpose.msra.mxu0 0.0
        %1017 = vmatprep.subr.mxu0 0.0
        %1018 = vmatpush1.xpose.msra.mxu0 0.0
        %1019 = vmatprep.subr.mxu0 0.0
        %1020 = vmatpush1.xpose.msra.mxu0 0.0
        %1021 = vmatprep.subr.mxu0 0.0
        %1022 = vmatpush1.xpose.msra.mxu0 0.0
        %1023 = vmatprep.subr.mxu0 0.0
        %1024 = vmatpush1.xpose.msra.mxu0 0.0
        %1025 = vmatprep.subr.mxu0 0.0
        %1026 = vmatpush1.xpose.msra.mxu0 0.0
        %1027 = vmatprep.subr.mxu0 0.0
        %1028 = vmatpush1.xpose.msra.mxu0 0.0
        %1029 = vmatprep.subr.mxu0 0.0
        %1030 = vmatpush1.xpose.msra.mxu0 0.0
        %1031 = vmatprep.subr.mxu0 0.0
        %1032 = vmatpush1.xpose.msra.mxu0 0.0
        %1033 = vmatprep.subr.mxu0 0.0
        %1034 = vmatpush1.xpose.msra.mxu0 0.0
        %1035 = vmatprep.subr.mxu0 0.0
        %1036 = vmatpush1.xpose.msra.mxu0 0.0
        %1037 = vmatprep.subr.mxu0 0.0
        %1038 = vmatpush1.xpose.msra.mxu0 0.0
        %1039 = vmatprep.mubr.f32.mxu0 0.0
        %1040 = vmatmul.mubr.f32.gmra.mrb[0].mxu0 %v971
        %v1041 = vpop.f32.mrb[0].mxu0
        %v1042 = vadd.f32 0.0, %v1041
        %v1043 = vpop.f32.mrb[0].mxu0
        %1044 = vdwg.mxu0
        %v1045 = vsel %vm806, %v1042, -inf
        %1046 = vmax.xlane.f32.xlu0 %v1045
        %v1047 = vpop.xlane.xlu0 %1046
        %v1048 = vsub.f32 %v1042, %v1047
        %v1049 = vmul.f32 %v1048, 1.442695
        %v1050 = vpow.pop %v1049
        %v1051 = vsel %vm806, %v1050, 0.0
        %1052 = vadd.xlane.f32.xlu0 %v1051
        %v1053 = vpop.xlane.xlu0 %1052
        %1055 = vrot.lane.b32.xlu0 %v799, 120
        %v1056 = vpop.permute.xlu0 %1055
        %v1059 = vsel %vm806, %v1050, 0
        %1061 = vmatprep.subr.mxu0 0.0
        %1062 = vmatpush1.msra.mxu0 %v1056
        %1063 = vmatprep.subr.mxu0 0.0
        %1064 = vmatpush1.msra.mxu0 0.0
        %1065 = vmatprep.subr.mxu0 0.0
        %1066 = vmatpush1.msra.mxu0 0.0
        %1067 = vmatprep.subr.mxu0 0.0
        %1068 = vmatpush1.msra.mxu0 0.0
        %1069 = vmatprep.subr.mxu0 0.0
        %1070 = vmatpush1.msra.mxu0 0.0
        %1071 = vmatprep.subr.mxu0 0.0
        %1072 = vmatpush1.msra.mxu0 0.0
        %1073 = vmatprep.subr.mxu0 0.0
        %1074 = vmatpush1.msra.mxu0 0.0
        %1075 = vmatprep.subr.mxu0 0.0
        %1076 = vmatpush1.msra.mxu0 0.0
        %1077 = vmatprep.subr.mxu0 0.0
        %1078 = vmatpush1.msra.mxu0 0.0
        %1079 = vmatprep.subr.mxu0 0.0
        %1080 = vmatpush1.msra.mxu0 0.0
        %1081 = vmatprep.subr.mxu0 0.0
        %1082 = vmatpush1.msra.mxu0 0.0
        %1083 = vmatprep.subr.mxu0 0.0
        %1084 = vmatpush1.msra.mxu0 0.0
        %1085 = vmatprep.subr.mxu0 0.0
        %1086 = vmatpush1.msra.mxu0 0.0
        %1087 = vmatprep.subr.mxu0 0.0
        %1088 = vmatpush1.msra.mxu0 0.0
        %1089 = vmatprep.subr.mxu0 0.0
        %1090 = vmatpush1.msra.mxu0 0.0
        %1091 = vmatprep.subr.mxu0 0.0
        %1092 = vmatpush1.msra.mxu0 0.0
        %1093 = vmatprep.subr.mxu0 0.0
        %1094 = vmatpush1.msra.mxu0 0.0
        %1095 = vmatprep.subr.mxu0 0.0
        %1096 = vmatpush1.msra.mxu0 0.0
        %1097 = vmatprep.subr.mxu0 0.0
        %1098 = vmatpush1.msra.mxu0 0.0
        %1099 = vmatprep.subr.mxu0 0.0
        %1100 = vmatpush1.msra.mxu0 0.0
        %1101 = vmatprep.subr.mxu0 0.0
        %1102 = vmatpush1.msra.mxu0 0.0
        %1103 = vmatprep.subr.mxu0 0.0
        %1104 = vmatpush1.msra.mxu0 0.0
        %1105 = vmatprep.subr.mxu0 0.0
        %1106 = vmatpush1.msra.mxu0 0.0
        %1107 = vmatprep.subr.mxu0 0.0
        %1108 = vmatpush1.msra.mxu0 0.0
        %1109 = vmatprep.subr.mxu0 0.0
        %1110 = vmatpush1.msra.mxu0 0.0
        %1111 = vmatprep.subr.mxu0 0.0
        %1112 = vmatpush1.msra.mxu0 0.0
        %1113 = vmatprep.subr.mxu0 0.0
        %1114 = vmatpush1.msra.mxu0 0.0
        %1115 = vmatprep.subr.mxu0 0.0
        %1116 = vmatpush1.msra.mxu0 0.0
        %1117 = vmatprep.subr.mxu0 0.0
        %1118 = vmatpush1.msra.mxu0 0.0
        %1119 = vmatprep.subr.mxu0 0.0
        %1120 = vmatpush1.msra.mxu0 0.0
        %1121 = vmatprep.subr.mxu0 0.0
        %1122 = vmatpush1.msra.mxu0 0.0
        %1123 = vmatprep.subr.mxu0 0.0
        %1124 = vmatpush1.msra.mxu0 0.0
        %1125 = vmatprep.mubr.f32.mxu0 0.0
        %1126 = vmatmul.mubr.f32.gmra.mrb[0].mxu0 %v1059
        %v1127 = vpop.f32.mrb[0].mxu0
        %v1128 = vadd.f32 0.0, %v1127
        %v1129 = vpop.f32.mrb[0].mxu0
        %1130 = vdwg.mxu0
        %v1131 = vrcp.pop %v1053
        %v1132 = vmul.f32 %v1128, %v1131
        %v1134 = vsel %vm806, %v1132, 0
        %1136 = vmatprep.subr.mxu0 0.0
        %1137 = vmatpush1.msra.mxu0 %v803
        %1138 = vmatprep.subr.mxu0 0.0
        %1139 = vmatpush1.msra.mxu0 0.0
        %1140 = vmatprep.subr.mxu0 0.0
        %1141 = vmatpush1.msra.mxu0 0.0
        %1142 = vmatprep.subr.mxu0 0.0
        %1143 = vmatpush1.msra.mxu0 0.0
        %1144 = vmatprep.subr.mxu0 0.0
        %1145 = vmatpush1.msra.mxu0 0.0
        %1146 = vmatprep.subr.mxu0 0.0
        %1147 = vmatpush1.msra.mxu0 0.0
        %1148 = vmatprep.subr.mxu0 0.0
        %1149 = vmatpush1.msra.mxu0 0.0
        %1150 = vmatprep.subr.mxu0 0.0
        %1151 = vmatpush1.msra.mxu0 0.0
        %1152 = vmatprep.subr.mxu0 0.0
        %1153 = vmatpush1.msra.mxu0 0.0
        %1154 = vmatprep.subr.mxu0 0.0
        %1155 = vmatpush1.msra.mxu0 0.0
        %1156 = vmatprep.subr.mxu0 0.0
        %1157 = vmatpush1.msra.mxu0 0.0
        %1158 = vmatprep.subr.mxu0 0.0
        %1159 = vmatpush1.msra.mxu0 0.0
        %1160 = vmatprep.subr.mxu0 0.0
        %1161 = vmatpush1.msra.mxu0 0.0
        %1162 = vmatprep.subr.mxu0 0.0
        %1163 = vmatpush1.msra.mxu0 0.0
        %1164 = vmatprep.subr.mxu0 0.0
        %1165 = vmatpush1.msra.mxu0 0.0
        %1166 = vmatprep.subr.mxu0 0.0
        %1167 = vmatpush1.msra.mxu0 0.0
        %1168 = vmatprep.subr.mxu0 0.0
        %1169 = vmatpush1.msra.mxu0 0.0
        %1170 = vmatprep.subr.mxu0 0.0
        %1171 = vmatpush1.msra.mxu0 0.0
        %1172 = vmatprep.subr.mxu0 0.0
        %1173 = vmatpush1.msra.mxu0 0.0
        %1174 = vmatprep.subr.mxu0 0.0
        %1175 = vmatpush1.msra.mxu0 0.0
        %1176 = vmatprep.subr.mxu0 0.0
        %1177 = vmatpush1.msra.mxu0 0.0
        %1178 = vmatprep.subr.mxu0 0.0
        %1179 = vmatpush1.msra.mxu0 0.0
        %1180 = vmatprep.subr.mxu0 0.0
        %1181 = vmatpush1.msra.mxu0 0.0
        %1182 = vmatprep.subr.mxu0 0.0
        %1183 = vmatpush1.msra.mxu0 0.0
        %1184 = vmatprep.subr.mxu0 0.0
        %1185 = vmatpush1.msra.mxu0 0.0
        %1186 = vmatprep.subr.mxu0 0.0
        %1187 = vmatpush1.msra.mxu0 0.0
        %1188 = vmatprep.subr.mxu0 0.0
        %1189 = vmatpush1.msra.mxu0 0.0
        %1190 = vmatprep.subr.mxu0 0.0
        %1191 = vmatpush1.msra.mxu0 0.0
        %1192 = vmatprep.subr.mxu0 0.0
        %1193 = vmatpush1.msra.mxu0 0.0
        %1194 = vmatprep.subr.mxu0 0.0
        %1195 = vmatpush1.msra.mxu0 0.0
        %1196 = vmatprep.subr.mxu0 0.0
        %1197 = vmatpush1.msra.mxu0 0.0
        %1198 = vmatprep.subr.mxu0 0.0
        %1199 = vmatpush1.msra.mxu0 0.0
        %1200 = vmatprep.mubr.f32.mxu0 0.0
        %1201 = vmatmul.mubr.f32.gmra.mrb[0].mxu0 %v1134
        %v1202 = vpop.f32.mrb[0].mxu0
        %v1203 = vadd.f32 0.0, %v1202
        %v1204 = vpop.f32.mrb[0].mxu0
        %1205 = vdwg.mxu0
        %v1207 = vsel %vm806, %v966, 0
        %1209 = vmatprep.subr.mxu0 0.0
        %1210 = vmatpush1.msra.mxu0 %v802
        %1211 = vmatprep.subr.mxu0 0.0
        %1212 = vmatpush1.msra.mxu0 0.0
        %1213 = vmatprep.subr.mxu0 0.0
        %1214 = vmatpush1.msra.mxu0 0.0
        %1215 = vmatprep.subr.mxu0 0.0
        %1216 = vmatpush1.msra.mxu0 0.0
        %1217 = vmatprep.subr.mxu0 0.0
        %1218 = vmatpush1.msra.mxu0 0.0
        %1219 = vmatprep.subr.mxu0 0.0
        %1220 = vmatpush1.msra.mxu0 0.0
        %1221 = vmatprep.subr.mxu0 0.0
        %1222 = vmatpush1.msra.mxu0 0.0
        %1223 = vmatprep.subr.mxu0 0.0
        %1224 = vmatpush1.msra.mxu0 0.0
        %1225 = vmatprep.subr.mxu0 0.0
        %1226 = vmatpush1.msra.mxu0 0.0
        %1227 = vmatprep.subr.mxu0 0.0
        %1228 = vmatpush1.msra.mxu0 0.0
        %1229 = vmatprep.subr.mxu0 0.0
        %1230 = vmatpush1.msra.mxu0 0.0
        %1231 = vmatprep.subr.mxu0 0.0
        %1232 = vmatpush1.msra.mxu0 0.0
        %1233 = vmatprep.subr.mxu0 0.0
        %1234 = vmatpush1.msra.mxu0 0.0
        %1235 = vmatprep.subr.mxu0 0.0
        %1236 = vmatpush1.msra.mxu0 0.0
        %1237 = vmatprep.subr.mxu0 0.0
        %1238 = vmatpush1.msra.mxu0 0.0
        %1239 = vmatprep.subr.mxu0 0.0
        %1240 = vmatpush1.msra.mxu0 0.0
        %1241 = vmatprep.subr.mxu0 0.0
        %1242 = vmatpush1.msra.mxu0 0.0
        %1243 = vmatprep.subr.mxu0 0.0
        %1244 = vmatpush1.msra.mxu0 0.0
        %1245 = vmatprep.subr.mxu0 0.0
        %1246 = vmatpush1.msra.mxu0 0.0
        %1247 = vmatprep.subr.mxu0 0.0
        %1248 = vmatpush1.msra.mxu0 0.0
        %1249 = vmatprep.subr.mxu0 0.0
        %1250 = vmatpush1.msra.mxu0 0.0
        %1251 = vmatprep.subr.mxu0 0.0
        %1252 = vmatpush1.msra.mxu0 0.0
        %1253 = vmatprep.subr.mxu0 0.0
        %1254 = vmatpush1.msra.mxu0 0.0
        %1255 = vmatprep.subr.mxu0 0.0
        %1256 = vmatpush1.msra.mxu0 0.0
        %1257 = vmatprep.subr.mxu0 0.0
        %1258 = vmatpush1.msra.mxu0 0.0
        %1259 = vmatprep.subr.mxu0 0.0
        %1260 = vmatpush1.msra.mxu0 0.0
        %1261 = vmatprep.subr.mxu0 0.0
        %1262 = vmatpush1.msra.mxu0 0.0
        %1263 = vmatprep.subr.mxu0 0.0
        %1264 = vmatpush1.msra.mxu0 0.0
        %1265 = vmatprep.subr.mxu0 0.0
        %1266 = vmatpush1.msra.mxu0 0.0
        %1267 = vmatprep.subr.mxu0 0.0
        %1268 = vmatpush1.msra.mxu0 0.0
        %1269 = vmatprep.subr.mxu0 0.0
        %1270 = vmatpush1.msra.mxu0 0.0
        %1271 = vmatprep.subr.mxu0 0.0
        %1272 = vmatpush1.msra.mxu0 0.0
        %1273 = vmatprep.mubr.f32.mxu0 0.0
        %1274 = vmatmul.mubr.f32.gmra.mrb[0].mxu0 %v1207
        %v1275 = vpop.f32.mrb[0].mxu0
        %v1276 = vadd.f32 %v1203, %v1275
        %v1277 = vpop.f32.mrb[0].mxu0
        %1278 = vdwg.mxu0
        %1279 = vrot.lane.b32.xlu0 %v631, 112
        %v1280 = vpop.permute.xlu0 %1279
        %1281 = vrot.lane.b32.xlu0 %v715, 112
        %v1282 = vpop.permute.xlu0 %1281
        %v1283 = vsel %vm806, %v1280, 0
        %v1285 = vsel %vm806, %v1282, 0
        %1287 = vmatprep.subr.mxu0 0.0
        %1288 = vmatpush1.xpose.msra.mxu0 %v1285
        %1289 = vmatprep.subr.mxu0 0.0
        %1290 = vmatpush1.xpose.msra.mxu0 0.0
        %1291 = vmatprep.subr.mxu0 0.0
        %1292 = vmatpush1.xpose.msra.mxu0 0.0
        %1293 = vmatprep.subr.mxu0 0.0
        %1294 = vmatpush1.xpose.msra.mxu0 0.0
        %1295 = vmatprep.subr.mxu0 0.0
        %1296 = vmatpush1.xpose.msra.mxu0 0.0
        %1297 = vmatprep.subr.mxu0 0.0
        %1298 = vmatpush1.xpose.msra.mxu0 0.0
        %1299 = vmatprep.subr.mxu0 0.0
        %1300 = vmatpush1.xpose.msra.mxu0 0.0
        %1301 = vmatprep.subr.mxu0 0.0
        %1302 = vmatpush1.xpose.msra.mxu0 0.0
        %1303 = vmatprep.subr.mxu0 0.0
        %1304 = vmatpush1.xpose.msra.mxu0 0.0
        %1305 = vmatprep.subr.mxu0 0.0
        %1306 = vmatpush1.xpose.msra.mxu0 0.0
        %1307 = vmatprep.subr.mxu0 0.0
        %1308 = vmatpush1.xpose.msra.mxu0 0.0
        %1309 = vmatprep.subr.mxu0 0.0
        %1310 = vmatpush1.xpose.msra.mxu0 0.0
        %1311 = vmatprep.subr.mxu0 0.0
        %1312 = vmatpush1.xpose.msra.mxu0 0.0
        %1313 = vmatprep.subr.mxu0 0.0
        %1314 = vmatpush1.xpose.msra.mxu0 0.0
        %1315 = vmatprep.subr.mxu0 0.0
        %1316 = vmatpush1.xpose.msra.mxu0 0.0
        %1317 = vmatprep.subr.mxu0 0.0
        %1318 = vmatpush1.xpose.msra.mxu0 0.0
        %1319 = vmatprep.subr.mxu0 0.0
        %1320 = vmatpush1.xpose.msra.mxu0 0.0
        %1321 = vmatprep.subr.mxu0 0.0
        %1322 = vmatpush1.xpose.msra.mxu0 0.0
        %1323 = vmatprep.subr.mxu0 0.0
        %1324 = vmatpush1.xpose.msra.mxu0 0.0
        %1325 = vmatprep.subr.mxu0 0.0
        %1326 = vmatpush1.xpose.msra.mxu0 0.0
        %1327 = vmatprep.subr.mxu0 0.0
        %1328 = vmatpush1.xpose.msra.mxu0 0.0
        %1329 = vmatprep.subr.mxu0 0.0
        %1330 = vmatpush1.xpose.msra.mxu0 0.0
        %1331 = vmatprep.subr.mxu0 0.0
        %1332 = vmatpush1.xpose.msra.mxu0 0.0
        %1333 = vmatprep.subr.mxu0 0.0
        %1334 = vmatpush1.xpose.msra.mxu0 0.0
        %1335 = vmatprep.subr.mxu0 0.0
        %1336 = vmatpush1.xpose.msra.mxu0 0.0
        %1337 = vmatprep.subr.mxu0 0.0
        %1338 = vmatpush1.xpose.msra.mxu0 0.0
        %1339 = vmatprep.subr.mxu0 0.0
        %1340 = vmatpush1.xpose.msra.mxu0 0.0
        %1341 = vmatprep.subr.mxu0 0.0
        %1342 = vmatpush1.xpose.msra.mxu0 0.0
        %1343 = vmatprep.subr.mxu0 0.0
        %1344 = vmatpush1.xpose.msra.mxu0 0.0
        %1345 = vmatprep.subr.mxu0 0.0
        %1346 = vmatpush1.xpose.msra.mxu0 0.0
        %1347 = vmatprep.subr.mxu0 0.0
        %1348 = vmatpush1.xpose.msra.mxu0 0.0
        %1349 = vmatprep.subr.mxu0 0.0
        %1350 = vmatpush1.xpose.msra.mxu0 0.0
        %1351 = vmatprep.mubr.f32.mxu0 0.0
        %1352 = vmatmul.mubr.f32.gmra.mrb[0].mxu0 %v1283
        %v1353 = vpop.f32.mrb[0].mxu0
        %v1354 = vadd.f32 0.0, %v1353
        %v1355 = vpop.f32.mrb[0].mxu0
        %1356 = vdwg.mxu0
        %v1357 = vsel %vm806, %v1354, -inf
        %1358 = vmax.xlane.f32.xlu0 %v1357
        %v1359 = vpop.xlane.xlu0 %1358
        %v1360 = vsub.f32 %v1354, %v1359
        %v1361 = vmul.f32 %v1360, 1.442695
        %v1362 = vpow.pop %v1361
        %v1363 = vsel %vm806, %v1362, 0.0
        %1364 = vadd.xlane.f32.xlu0 %v1363
        %v1365 = vpop.xlane.xlu0 %1364
        %1366 = vrot.lane.b32.xlu0 %v799, 112
        %v1367 = vpop.permute.xlu0 %1366
        %v1370 = vsel %vm806, %v1362, 0
        %1372 = vmatprep.subr.mxu0 0.0
        %1373 = vmatpush1.msra.mxu0 %v1367
        %1374 = vmatprep.subr.mxu0 0.0
        %1375 = vmatpush1.msra.mxu0 0.0
        %1376 = vmatprep.subr.mxu0 0.0
        %1377 = vmatpush1.msra.mxu0 0.0
        %1378 = vmatprep.subr.mxu0 0.0
        %1379 = vmatpush1.msra.mxu0 0.0
        %1380 = vmatprep.subr.mxu0 0.0
        %1381 = vmatpush1.msra.mxu0 0.0
        %1382 = vmatprep.subr.mxu0 0.0
        %1383 = vmatpush1.msra.mxu0 0.0
        %1384 = vmatprep.subr.mxu0 0.0
        %1385 = vmatpush1.msra.mxu0 0.0
        %1386 = vmatprep.subr.mxu0 0.0
        %1387 = vmatpush1.msra.mxu0 0.0
        %1388 = vmatprep.subr.mxu0 0.0
        %1389 = vmatpush1.msra.mxu0 0.0
        %1390 = vmatprep.subr.mxu0 0.0
        %1391 = vmatpush1.msra.mxu0 0.0
        %1392 = vmatprep.subr.mxu0 0.0
        %1393 = vmatpush1.msra.mxu0 0.0
        %1394 = vmatprep.subr.mxu0 0.0
        %1395 = vmatpush1.msra.mxu0 0.0
        %1396 = vmatprep.subr.mxu0 0.0
        %1397 = vmatpush1.msra.mxu0 0.0
        %1398 = vmatprep.subr.mxu0 0.0
        %1399 = vmatpush1.msra.mxu0 0.0
        %1400 = vmatprep.subr.mxu0 0.0
        %1401 = vmatpush1.msra.mxu0 0.0
        %1402 = vmatprep.subr.mxu0 0.0
        %1403 = vmatpush1.msra.mxu0 0.0
        %1404 = vmatprep.subr.mxu0 0.0
        %1405 = vmatpush1.msra.mxu0 0.0
        %1406 = vmatprep.subr.mxu0 0.0
        %1407 = vmatpush1.msra.mxu0 0.0
        %1408 = vmatprep.subr.mxu0 0.0
        %1409 = vmatpush1.msra.mxu0 0.0
        %1410 = vmatprep.subr.mxu0 0.0
        %1411 = vmatpush1.msra.mxu0 0.0
        %1412 = vmatprep.subr.mxu0 0.0
        %1413 = vmatpush1.msra.mxu0 0.0
        %1414 = vmatprep.subr.mxu0 0.0
        %1415 = vmatpush1.msra.mxu0 0.0
        %1416 = vmatprep.subr.mxu0 0.0
        %1417 = vmatpush1.msra.mxu0 0.0
        %1418 = vmatprep.subr.mxu0 0.0
        %1419 = vmatpush1.msra.mxu0 0.0
        %1420 = vmatprep.subr.mxu0 0.0
        %1421 = vmatpush1.msra.mxu0 0.0
        %1422 = vmatprep.subr.mxu0 0.0
        %1423 = vmatpush1.msra.mxu0 0.0
        %1424 = vmatprep.subr.mxu0 0.0
        %1425 = vmatpush1.msra.mxu0 0.0
        %1426 = vmatprep.subr.mxu0 0.0
        %1427 = vmatpush1.msra.mxu0 0.0
        %1428 = vmatprep.subr.mxu0 0.0
        %1429 = vmatpush1.msra.mxu0 0.0
        %1430 = vmatprep.subr.mxu0 0.0
        %1431 = vmatpush1.msra.mxu0 0.0
        %1432 = vmatprep.subr.mxu0 0.0
        %1433 = vmatpush1.msra.mxu0 0.0
        %1434 = vmatprep.subr.mxu0 0.0
        %1435 = vmatpush1.msra.mxu0 0.0
        %1436 = vmatprep.mubr.f32.mxu0 0.0
        %1437 = vmatmul.mubr.f32.gmra.mrb[0].mxu0 %v1370
        %v1438 = vpop.f32.mrb[0].mxu0
        %v1439 = vadd.f32 0.0, %v1438
        %v1440 = vpop.f32.mrb[0].mxu0
        %1441 = vdwg.mxu0
        %v1442 = vrcp.pop %v1365
        %v1443 = vmul.f32 %v1439, %v1442
        %v1445 = vsel %vm806, %v1443, 0
        %1447 = vmatprep.subr.mxu0 0.0
        %1448 = vmatpush1.msra.mxu0 %v804
        %1449 = vmatprep.subr.mxu0 0.0
        %1450 = vmatpush1.msra.mxu0 0.0
        %1451 = vmatprep.subr.mxu0 0.0
        %1452 = vmatpush1.msra.mxu0 0.0
        %1453 = vmatprep.subr.mxu0 0.0
        %1454 = vmatpush1.msra.mxu0 0.0
        %1455 = vmatprep.subr.mxu0 0.0
        %1456 = vmatpush1.msra.mxu0 0.0
        %1457 = vmatprep.subr.mxu0 0.0
        %1458 = vmatpush1.msra.mxu0 0.0
        %1459 = vmatprep.subr.mxu0 0.0
        %1460 = vmatpush1.msra.mxu0 0.0
        %1461 = vmatprep.subr.mxu0 0.0
        %1462 = vmatpush1.msra.mxu0 0.0
        %1463 = vmatprep.subr.mxu0 0.0
        %1464 = vmatpush1.msra.mxu0 0.0
        %1465 = vmatprep.subr.mxu0 0.0
        %1466 = vmatpush1.msra.mxu0 0.0
        %1467 = vmatprep.subr.mxu0 0.0
        %1468 = vmatpush1.msra.mxu0 0.0
        %1469 = vmatprep.subr.mxu0 0.0
        %1470 = vmatpush1.msra.mxu0 0.0
        %1471 = vmatprep.subr.mxu0 0.0
        %1472 = vmatpush1.msra.mxu0 0.0
        %1473 = vmatprep.subr.mxu0 0.0
        %1474 = vmatpush1.msra.mxu0 0.0
        %1475 = vmatprep.subr.mxu0 0.0
        %1476 = vmatpush1.msra.mxu0 0.0
        %1477 = vmatprep.subr.mxu0 0.0
        %1478 = vmatpush1.msra.mxu0 0.0
        %1479 = vmatprep.subr.mxu0 0.0
        %1480 = vmatpush1.msra.mxu0 0.0
        %1481 = vmatprep.subr.mxu0 0.0
        %1482 = vmatpush1.msra.mxu0 0.0
        %1483 = vmatprep.subr.mxu0 0.0
        %1484 = vmatpush1.msra.mxu0 0.0
        %1485 = vmatprep.subr.mxu0 0.0
        %1486 = vmatpush1.msra.mxu0 0.0
        %1487 = vmatprep.subr.mxu0 0.0
        %1488 = vmatpush1.msra.mxu0 0.0
        %1489 = vmatprep.subr.mxu0 0.0
        %1490 = vmatpush1.msra.mxu0 0.0
        %1491 = vmatprep.subr.mxu0 0.0
        %1492 = vmatpush1.msra.mxu0 0.0
        %1493 = vmatprep.subr.mxu0 0.0
        %1494 = vmatpush1.msra.mxu0 0.0
        %1495 = vmatprep.subr.mxu0 0.0
        %1496 = vmatpush1.msra.mxu0 0.0
        %1497 = vmatprep.subr.mxu0 0.0
        %1498 = vmatpush1.msra.mxu0 0.0
        %1499 = vmatprep.subr.mxu0 0.0
        %1500 = vmatpush1.msra.mxu0 0.0
        %1501 = vmatprep.subr.mxu0 0.0
        %1502 = vmatpush1.msra.mxu0 0.0
        %1503 = vmatprep.subr.mxu0 0.0
        %1504 = vmatpush1.msra.mxu0 0.0
        %1505 = vmatprep.subr.mxu0 0.0
        %1506 = vmatpush1.msra.mxu0 0.0
        %1507 = vmatprep.subr.mxu0 0.0
        %1508 = vmatpush1.msra.mxu0 0.0
        %1509 = vmatprep.subr.mxu0 0.0
        %1510 = vmatpush1.msra.mxu0 0.0
        %1511 = vmatprep.mubr.f32.mxu0 0.0
        %1512 = vmatmul.mubr.f32.gmra.mrb[0].mxu0 %v1445
        %v1513 = vpop.f32.mrb[0].mxu0
        %v1514 = vadd.f32 0.0, %v1513
        %v1515 = vpop.f32.mrb[0].mxu0
        %1516 = vdwg.mxu0
        %v1517 = vadd.f32 %v1276, %v1514
        %1518 = vrot.lane.b32.xlu0 %v631, 104
        %v1519 = vpop.permute.xlu0 %1518
        %1520 = vrot.lane.b32.xlu0 %v715, 104
        %v1521 = vpop.permute.xlu0 %1520
        %v1522 = vsel %vm806, %v1519, 0
        %v1524 = vsel %vm806, %v1521, 0
        %1526 = vmatprep.subr.mxu0 0.0
        %1527 = vmatpush1.xpose.msra.mxu0 %v1524
        %1528 = vmatprep.subr.mxu0 0.0
        %1529 = vmatpush1.xpose.msra.mxu0 0.0
        %1530 = vmatprep.subr.mxu0 0.0
        %1531 = vmatpush1.xpose.msra.mxu0 0.0
        %1532 = vmatprep.subr.mxu0 0.0
        %1533 = vmatpush1.xpose.msra.mxu0 0.0
        %1534 = vmatprep.subr.mxu0 0.0
        %1535 = vmatpush1.xpose.msra.mxu0 0.0
        %1536 = vmatprep.subr.mxu0 0.0
        %1537 = vmatpush1.xpose.msra.mxu0 0.0
        %1538 = vmatprep.subr.mxu0 0.0
        %1539 = vmatpush1.xpose.msra.mxu0 0.0
        %1540 = vmatprep.subr.mxu0 0.0
        %1541 = vmatpush1.xpose.msra.mxu0 0.0
        %1542 = vmatprep.subr.mxu0 0.0
        %1543 = vmatpush1.xpose.msra.mxu0 0.0
        %1544 = vmatprep.subr.mxu0 0.0
        %1545 = vmatpush1.xpose.msra.mxu0 0.0
        %1546 = vmatprep.subr.mxu0 0.0
        %1547 = vmatpush1.xpose.msra.mxu0 0.0
        %1548 = vmatprep.subr.mxu0 0.0
        %1549 = vmatpush1.xpose.msra.mxu0 0.0
        %1550 = vmatprep.subr.mxu0 0.0
        %1551 = vmatpush1.xpose.msra.mxu0 0.0
        %1552 = vmatprep.subr.mxu0 0.0
        %1553 = vmatpush1.xpose.msra.mxu0 0.0
        %1554 = vmatprep.subr.mxu0 0.0
        %1555 = vmatpush1.xpose.msra.mxu0 0.0
        %1556 = vmatprep.subr.mxu0 0.0
        %1557 = vmatpush1.xpose.msra.mxu0 0.0
        %1558 = vmatprep.subr.mxu0 0.0
        %1559 = vmatpush1.xpose.msra.mxu0 0.0
        %1560 = vmatprep.subr.mxu0 0.0
        %1561 = vmatpush1.xpose.msra.mxu0 0.0
        %1562 = vmatprep.subr.mxu0 0.0
        %1563 = vmatpush1.xpose.msra.mxu0 0.0
        %1564 = vmatprep.subr.mxu0 0.0
        %1565 = vmatpush1.xpose.msra.mxu0 0.0
        %1566 = vmatprep.subr.mxu0 0.0
        %1567 = vmatpush1.xpose.msra.mxu0 0.0
        %1568 = vmatprep.subr.mxu0 0.0
        %1569 = vmatpush1.xpose.msra.mxu0 0.0
        %1570 = vmatprep.subr.mxu0 0.0
        %1571 = vmatpush1.xpose.msra.mxu0 0.0
        %1572 = vmatprep.subr.mxu0 0.0
        %1573 = vmatpush1.xpose.msra.mxu0 0.0
        %1574 = vmatprep.subr.mxu0 0.0
        %1575 = vmatpush1.xpose.msra.mxu0 0.0
        %1576 = vmatprep.subr.mxu0 0.0
        %1577 = vmatpush1.xpose.msra.mxu0 0.0
        %1578 = vmatprep.subr.mxu0 0.0
        %1579 = vmatpush1.xpose.msra.mxu0 0.0
        %1580 = vmatprep.subr.mxu0 0.0
        %1581 = vmatpush1.xpose.msra.mxu0 0.0
        %1582 = vmatprep.subr.mxu0 0.0
        %1583 = vmatpush1.xpose.msra.mxu0 0.0
        %1584 = vmatprep.subr.mxu0 0.0
        %1585 = vmatpush1.xpose.msra.mxu0 0.0
        %1586 = vmatprep.subr.mxu0 0.0
        %1587 = vmatpush1.xpose.msra.mxu0 0.0
        %1588 = vmatprep.subr.mxu0 0.0
        %1589 = vmatpush1.xpose.msra.mxu0 0.0
        %1590 = vmatprep.mubr.f32.mxu0 0.0
        %1591 = vmatmul.mubr.f32.gmra.mrb[0].mxu0 %v1522
        %v1592 = vpop.f32.mrb[0].mxu0
        %v1593 = vadd.f32 0.0, %v1592
        %v1594 = vpop.f32.mrb[0].mxu0
        %1595 = vdwg.mxu0
        %v1596 = vsel %vm806, %v1593, -inf
        %1597 = vmax.xlane.f32.xlu0 %v1596
        %v1598 = vpop.xlane.xlu0 %1597
        %v1599 = vsub.f32 %v1593, %v1598
        %v1600 = vmul.f32 %v1599, 1.442695
        %v1601 = vpow.pop %v1600
        %v1602 = vsel %vm806, %v1601, 0.0
        %1603 = vadd.xlane.f32.xlu0 %v1602
        %v1604 = vpop.xlane.xlu0 %1603
        %1605 = vrot.lane.b32.xlu0 %v799, 104
        %v1606 = vpop.permute.xlu0 %1605
        %v1609 = vsel %vm806, %v1601, 0
        %1611 = vmatprep.subr.mxu0 0.0
        %1612 = vmatpush1.msra.mxu0 %v1606
        %1613 = vmatprep.subr.mxu0 0.0
        %1614 = vmatpush1.msra.mxu0 0.0
        %1615 = vmatprep.subr.mxu0 0.0
        %1616 = vmatpush1.msra.mxu0 0.0
        %1617 = vmatprep.subr.mxu0 0.0
        %1618 = vmatpush1.msra.mxu0 0.0
        %1619 = vmatprep.subr.mxu0 0.0
        %1620 = vmatpush1.msra.mxu0 0.0
        %1621 = vmatprep.subr.mxu0 0.0
        %1622 = vmatpush1.msra.mxu0 0.0
        %1623 = vmatprep.subr.mxu0 0.0
        %1624 = vmatpush1.msra.mxu0 0.0
        %1625 = vmatprep.subr.mxu0 0.0
        %1626 = vmatpush1.msra.mxu0 0.0
        %1627 = vmatprep.subr.mxu0 0.0
        %1628 = vmatpush1.msra.mxu0 0.0
        %1629 = vmatprep.subr.mxu0 0.0
        %1630 = vmatpush1.msra.mxu0 0.0
        %1631 = vmatprep.subr.mxu0 0.0
        %1632 = vmatpush1.msra.mxu0 0.0
        %1633 = vmatprep.subr.mxu0 0.0
        %1634 = vmatpush1.msra.mxu0 0.0
        %1635 = vmatprep.subr.mxu0 0.0
        %1636 = vmatpush1.msra.mxu0 0.0
        %1637 = vmatprep.subr.mxu0 0.0
        %1638 = vmatpush1.msra.mxu0 0.0
        %1639 = vmatprep.subr.mxu0 0.0
        %1640 = vmatpush1.msra.mxu0 0.0
        %1641 = vmatprep.subr.mxu0 0.0
        %1642 = vmatpush1.msra.mxu0 0.0
        %1643 = vmatprep.subr.mxu0 0.0
        %1644 = vmatpush1.msra.mxu0 0.0
        %1645 = vmatprep.subr.mxu0 0.0
        %1646 = vmatpush1.msra.mxu0 0.0
        %1647 = vmatprep.subr.mxu0 0.0
        %1648 = vmatpush1.msra.mxu0 0.0
        %1649 = vmatprep.subr.mxu0 0.0
        %1650 = vmatpush1.msra.mxu0 0.0
        %1651 = vmatprep.subr.mxu0 0.0
        %1652 = vmatpush1.msra.mxu0 0.0
        %1653 = vmatprep.subr.mxu0 0.0
        %1654 = vmatpush1.msra.mxu0 0.0
        %1655 = vmatprep.subr.mxu0 0.0
        %1656 = vmatpush1.msra.mxu0 0.0
        %1657 = vmatprep.subr.mxu0 0.0
        %1658 = vmatpush1.msra.mxu0 0.0
        %1659 = vmatprep.subr.mxu0 0.0
        %1660 = vmatpush1.msra.mxu0 0.0
        %1661 = vmatprep.subr.mxu0 0.0
        %1662 = vmatpush1.msra.mxu0 0.0
        %1663 = vmatprep.subr.mxu0 0.0
        %1664 = vmatpush1.msra.mxu0 0.0
        %1665 = vmatprep.subr.mxu0 0.0
        %1666 = vmatpush1.msra.mxu0 0.0
        %1667 = vmatprep.subr.mxu0 0.0
        %1668 = vmatpush1.msra.mxu0 0.0
        %1669 = vmatprep.subr.mxu0 0.0
        %1670 = vmatpush1.msra.mxu0 0.0
        %1671 = vmatprep.subr.mxu0 0.0
        %1672 = vmatpush1.msra.mxu0 0.0
        %1673 = vmatprep.subr.mxu0 0.0
        %1674 = vmatpush1.msra.mxu0 0.0
        %1675 = vmatprep.mubr.f32.mxu0 0.0
        %1676 = vmatmul.mubr.f32.gmra.mrb[0].mxu0 %v1609
        %v1677 = vpop.f32.mrb[0].mxu0
        %v1678 = vadd.f32 0.0, %v1677
        %v1679 = vpop.f32.mrb[0].mxu0
        %1680 = vdwg.mxu0
        %v1681 = vrcp.pop %v1604
        %v1682 = vmul.f32 %v1678, %v1681
        %v1684 = vsel %vm806, %v1682, 0
        %1686 = vmatprep.subr.mxu0 0.0
        %1687 = vmatpush1.msra.mxu0 %v805
        %1688 = vmatprep.subr.mxu0 0.0
        %1689 = vmatpush1.msra.mxu0 0.0
        %1690 = vmatprep.subr.mxu0 0.0
        %1691 = vmatpush1.msra.mxu0 0.0
        %1692 = vmatprep.subr.mxu0 0.0
        %1693 = vmatpush1.msra.mxu0 0.0
        %1694 = vmatprep.subr.mxu0 0.0
        %1695 = vmatpush1.msra.mxu0 0.0
        %1696 = vmatprep.subr.mxu0 0.0
        %1697 = vmatpush1.msra.mxu0 0.0
        %1698 = vmatprep.subr.mxu0 0.0
        %1699 = vmatpush1.msra.mxu0 0.0
        %1700 = vmatprep.subr.mxu0 0.0
        %1701 = vmatpush1.msra.mxu0 0.0
        %1702 = vmatprep.subr.mxu0 0.0
        %1703 = vmatpush1.msra.mxu0 0.0
        %1704 = vmatprep.subr.mxu0 0.0
        %1705 = vmatpush1.msra.mxu0 0.0
        %1706 = vmatprep.subr.mxu0 0.0
        %1707 = vmatpush1.msra.mxu0 0.0
        %1708 = vmatprep.subr.mxu0 0.0
        %1709 = vmatpush1.msra.mxu0 0.0
        %1710 = vmatprep.subr.mxu0 0.0
        %1711 = vmatpush1.msra.mxu0 0.0
        %1712 = vmatprep.subr.mxu0 0.0
        %1713 = vmatpush1.msra.mxu0 0.0
        %1714 = vmatprep.subr.mxu0 0.0
        %1715 = vmatpush1.msra.mxu0 0.0
        %1716 = vmatprep.subr.mxu0 0.0
        %1717 = vmatpush1.msra.mxu0 0.0
        %1718 = vmatprep.subr.mxu0 0.0
        %1719 = vmatpush1.msra.mxu0 0.0
        %1720 = vmatprep.subr.mxu0 0.0
        %1721 = vmatpush1.msra.mxu0 0.0
        %1722 = vmatprep.subr.mxu0 0.0
        %1723 = vmatpush1.msra.mxu0 0.0
        %1724 = vmatprep.subr.mxu0 0.0
        %1725 = vmatpush1.msra.mxu0 0.0
        %1726 = vmatprep.subr.mxu0 0.0
        %1727 = vmatpush1.msra.mxu0 0.0
        %1728 = vmatprep.subr.mxu0 0.0
        %1729 = vmatpush1.msra.mxu0 0.0
        %1730 = vmatprep.subr.mxu0 0.0
        %1731 = vmatpush1.msra.mxu0 0.0
        %1732 = vmatprep.subr.mxu0 0.0
        %1733 = vmatpush1.msra.mxu0 0.0
        %1734 = vmatprep.subr.mxu0 0.0
        %1735 = vmatpush1.msra.mxu0 0.0
        %1736 = vmatprep.subr.mxu0 0.0
        %1737 = vmatpush1.msra.mxu0 0.0
        %1738 = vmatprep.subr.mxu0 0.0
        %1739 = vmatpush1.msra.mxu0 0.0
        %1740 = vmatprep.subr.mxu0 0.0
        %1741 = vmatpush1.msra.mxu0 0.0
        %1742 = vmatprep.subr.mxu0 0.0
        %1743 = vmatpush1.msra.mxu0 0.0
        %1744 = vmatprep.subr.mxu0 0.0
        %1745 = vmatpush1.msra.mxu0 0.0
        %1746 = vmatprep.subr.mxu0 0.0
        %1747 = vmatpush1.msra.mxu0 0.0
        %1748 = vmatprep.subr.mxu0 0.0
        %1749 = vmatpush1.msra.mxu0 0.0
        %1750 = vmatprep.mubr.f32.mxu0 0.0
        %1751 = vmatmul.mubr.f32.gmra.mrb[0].mxu0 %v1684
        %v1752 = vpop.f32.mrb[0].mxu0
        %v1753 = vadd.f32 0.0, %v1752
        %v1754 = vpop.f32.mrb[0].mxu0
        %1755 = vdwg.mxu0
        %v1756 = vadd.f32 %v1517, %v1753
        %v1757 = vld [vmem:[%s10] sm:$0x1]
        %v1759 = vlaneseq
        %v1760 = vshrl.u32 %v1759, 7
        %v1761 = vsub.s32 0, %v1760
        %v1762 = vrot.slane %v1757, %v1761
        %v1764 = vadd.f32 %v1756, %v1762
        %1765 = vst.msk [vmem:[%s545] sm:$0xff] %vm560, %v1764
        %s1766 = sand.u32 %s303, 1
        %s1767 = scalar_lea.sflag [#allocation4], %s1766
        %s1768 = sand.u32 %s303, 1
        %s1769 = smul.addr %s1768, 8
        %s1770 = scalar_lea.vmem [#allocation14], %s1769
        // Predicated region
        $region93: #{tpu_custom_call.1} parent=63 // pred_check
          %p1771 = pneg %p313
        $region94: #{tpu_custom_call.1} parent=63 // pred_check_branch
          %1773 = sbr.rel (%p1771) target = $region96
        $region95: #{tpu_custom_call.1} parent=63 // pred_region
          %s1775 = ssub.s32 128, 128
          %1776 = vsyncadd %s1767, %s1775
          %s1777 = sadd.s32 %s38, %s37
          %s1778 = smul.addr %s1777, 128
          %s1779 = scalar_lea.hbm %s11, %s1778
          %s1781 = sshll.u32 %s1770, 4
          %s1782 = int_to_ptr.vmem [resolvable:$true] %s1781
          %1784 = dma.vmem_to_hbm [thread:$0]  %s1782, 128, %s1779, %s1767
        $region96: #{tpu_custom_call.1} parent=63 // pred_fallthru
          _
      $region64: #{tpu_custom_call.1} parent=5 // pred_fallthru
        _
      %p1785 = scmp.le.s32.totalorder 2, %s28
      // Predicated region
      $region97: #{tpu_custom_call.1} parent=5 // pred_check
        %p1786 = pneg %p1785
      $region98: #{tpu_custom_call.1} parent=5 // pred_check_branch
        %1788 = sbr.rel (%p1786) target = $region100
      $region99: #{tpu_custom_call.1} parent=5 // pred_region
        %s1789 = ssub.s32 %s28, 2
        // Predicated region
        $region101: #{tpu_custom_call.1} parent=99 // pred_check
          %p1790 = pneg %p319
        $region102: #{tpu_custom_call.1} parent=99 // pred_check_branch
          %1792 = sbr.rel (%p1790) target = $region104
        $region103: #{tpu_custom_call.1} parent=99 // pred_region
          %s1793 = sand.u32 %s304, 1
          %s1794 = scalar_lea.sflag [#allocation4], %s1793
          %s1795 = sand.u32 %s304, 1
          %s1796 = smul.addr %s1795, 8
          %s1797 = scalar_lea.vmem [#allocation14], %s1796
          %1798 = dma.done %s1794, 128
        $region104: #{tpu_custom_call.1} parent=99 // pred_fallthru
          _
      $region100: #{tpu_custom_call.1} parent=5 // pred_fallthru
        _
    $region6: #{tpu_custom_call.1} parent=1 // loop_footer
      %s32 = sadd.s32 1, %s28
    $region7: #{tpu_custom_call.1} parent=1 // loop_footer_branch
      %27 = sbr.rel target = $region3
    $region8: #{tpu_custom_call.1} parent=1 // loop_exit
      _
    %1799 = vsyncpa [#allocation3], 1
    %s1800 = scalar_lea.sflag [#allocation3], 1
    %1801 = vsyncpa %s1800, 1
    %1802 = vsyncpa [#allocation6], 1
    %s1803 = scalar_lea.sflag [#allocation6], 1
    %1804 = vsyncpa %s1803, 1
    %1805 = vsyncpa [#allocation9], 1
    %1806 = vsyncpa [#allocation12], 1
    %1807 = vsyncpa [#allocation4], 1
    %s1808 = scalar_lea.sflag [#allocation4], 1
    %1809 = vsyncpa %s1808, 1

</llo_original>
